<compile_context>
chip_gen: v7x
topology: tpu7x:2x2x1
jax: 0.10.0
libtpu: 0.0.40
codegen_flags: <defaults>
</compile_context>

<pallas_src>
import jax
import jax.numpy as jnp
import numpy as np
from jax.experimental import pallas as pl
from jax.experimental.pallas import tpu as pltpu

CLS_P, CLS_H, CLS_F = 7, 3, 2
C_XP, C_XL, C_XH, C_XF = 60, 256, 20, 10      # conv3 input = 60 + 48 = 108
C_MID, C_HID = 48, 256
MAX_TILE_P = 1024        # pixels (lanes) per grid step; sweep 512-2048 on real sizes
BN_EPS = 1e-5


def _round_up(x, m):
    return ((x + m - 1) // m) * m


# ----------------------------------------------------------------------------
# Pallas kernel: conv2 -> concat -> conv3(x2) -> conv6, fused per pixel tile.
# Channel-major: channels on sublanes, pixels on lanes.  bf16 MXU operands,
# f32 accumulation / bias / ReLU, f32 (7, TP) lane-dense output store.
# ----------------------------------------------------------------------------
def _fused_segp_kernel(xp_ref, xl_ref,
                       w2_ref, b2_ref,
                       w3p_ref, w3l_ref, b3a_ref,
                       w3b_ref, b3b_ref,
                       w6_ref, b6_ref,
                       out_ref):
    xl = xl_ref[0].astype(jnp.bfloat16)        # (256, TP): f32 HBM read, VPU cast
    xp = xp_ref[0]                             # (60, TP) bf16

    # conv2 + BN(folded) + ReLU : 256 -> 48
    y48 = jnp.dot(w2_ref[...], xl, preferred_element_type=jnp.float32) + b2_ref[...]
    y48 = jnp.maximum(y48, 0.0)

    # conv3 stage 1 on cat([xp, y48], C) == concat-free split matmul (108 -> 256)
    # TODO(synk): on v5e, concat xp/y48 into a (128, TP) VMEM scratch and do a
    # single K=108 matmul to halve MXU passes (v6e/v7x are mem-bound; skip there).
    h1 = jnp.dot(w3p_ref[...], xp, preferred_element_type=jnp.float32)
    h1 = h1 + jnp.dot(w3l_ref[...], y48.astype(jnp.bfloat16),
                      preferred_element_type=jnp.float32)
    h1 = jnp.maximum(h1 + b3a_ref[...], 0.0)

    # conv3 stage 2 : 256 -> 256, BN + ReLU
    h2 = jnp.dot(w3b_ref[...], h1.astype(jnp.bfloat16),
                 preferred_element_type=jnp.float32) + b3b_ref[...]
    h2 = jnp.maximum(h2, 0.0)

    # conv6 : 256 -> 7 (+ bias); pixels on lanes => lane-dense store.
    out_ref[0] = (jnp.dot(w6_ref[...], h2.astype(jnp.bfloat16),
                          preferred_element_type=jnp.float32) + b6_ref[...])


# ----------------------------------------------------------------------------
# Wrapper
# ----------------------------------------------------------------------------
def fused_seg_p(xp_cm, xl_cm, p):
    """xp_cm: (N, 60, HW) bf16, xl_cm: (N, 256, HW) f32 -> (N, 7, HW) f32."""
    n, _, hw = xl_cm.shape
    tp = min(MAX_TILE_P, _round_up(hw, 128))
    grid = (n, pl.cdiv(hw, tp))

    # bf16 MXU weights pre-transposed to (Cout, Cin); biases (Cout, 1) f32.
    w2t = p["w2f"].T.astype(jnp.bfloat16)          # (48, 256)
    w3pt = p["w3a_p"].T.astype(jnp.bfloat16)       # (256, 60)
    w3lt = p["w3a_l"].T.astype(jnp.bfloat16)       # (256, 48)
    w3bt = p["w3bf"].T.astype(jnp.bfloat16)        # (256, 256)
    w6t = p["w6"].T.astype(jnp.bfloat16)           # (7, 256)
    b2 = p["b2f"].reshape(C_MID, 1)
    b3a = p["b3af"].reshape(C_HID, 1)
    b3b = p["b3bf"].reshape(C_HID, 1)
    b6 = p["b6"].reshape(CLS_P, 1)

    per_px_macs = (C_XL * C_MID + C_XP * C_HID + C_MID * C_HID
                   + C_HID * C_HID + C_HID * CLS_P)
    w_bytes = 2 * per_px_macs
    cost = pl.CostEstimate(
        flops=2 * n * hw * per_px_macs,
        transcendentals=0,
        bytes_accessed=n * hw * (C_XL * 4 + C_XP * 2 + CLS_P * 4) + w_bytes)

    const = lambda i, j: (0, 0)
    # NOTE: weight/bias specs use a constant index_map; they stay resident.
    # (pl.Buffered(1) single-buffering considered but left at default — ~0.2 MiB.)
    return pl.pallas_call(
        _fused_segp_kernel,
        out_shape=jax.ShapeDtypeStruct((n, CLS_P, hw), jnp.float32),
        grid=grid,
        in_specs=[
            pl.BlockSpec((1, C_XP, tp), lambda i, j: (i, 0, j)),
            pl.BlockSpec((1, C_XL, tp), lambda i, j: (i, 0, j)),
            pl.BlockSpec((C_MID, C_XL), const),
            pl.BlockSpec((C_MID, 1), const),
            pl.BlockSpec((C_HID, C_XP), const),
            pl.BlockSpec((C_HID, C_MID), const),
            pl.BlockSpec((C_HID, 1), const),
            pl.BlockSpec((C_HID, C_HID), const),
            pl.BlockSpec((C_HID, 1), const),
            pl.BlockSpec((CLS_P, C_HID), const),
            pl.BlockSpec((CLS_P, 1), const),
        ],
        out_specs=pl.BlockSpec((1, CLS_P, tp), lambda i, j: (i, 0, j)),
        compiler_params=pltpu.CompilerParams(
            dimension_semantics=("parallel", "parallel")),
        cost_estimate=cost,
    )(xp_cm, xl_cm, w2t, b2, w3pt, w3lt, b3a, w3bt, b3b, w6t, b6)


def _pw_head_xla(x_nchw, w, b):
    """Tiny 1x1 conv heads (20->3, 10->2) kept as plain XLA ops (default precision)."""
    y = jnp.einsum("nchw,cd->ndhw", x_nchw, w)
    return y + b[None, :, None, None]


# ----------------------------------------------------------------------------
# Glue: bilinear upsample (align_corners=True), parameter init, forward
# ----------------------------------------------------------------------------
def _bilinear_align_corners(x, out_h, out_w):
    """PyTorch F.interpolate(mode='bilinear', align_corners=True). x: NCHW."""
    _, _, h, w = x.shape
    ys = (jnp.zeros((out_h,), jnp.float32) if out_h == 1
          else jnp.arange(out_h, dtype=jnp.float32) * (h - 1) / (out_h - 1))
    xs = (jnp.zeros((out_w,), jnp.float32) if out_w == 1
          else jnp.arange(out_w, dtype=jnp.float32) * (w - 1) / (out_w - 1))
    y0 = jnp.floor(ys).astype(jnp.int32)
    x0 = jnp.floor(xs).astype(jnp.int32)
    y1 = jnp.minimum(y0 + 1, h - 1)
    x1 = jnp.minimum(x0 + 1, w - 1)
    wy = (ys - y0.astype(jnp.float32))[None, None, :, None]
    wx = (xs - x0.astype(jnp.float32))[None, None, None, :]
    r0 = x[:, :, y0, :]
    r1 = x[:, :, y1, :]
    xr = r0 * (1.0 - wy) + r1 * wy
    c0 = xr[:, :, :, x0]
    c1 = xr[:, :, :, x1]
    return c0 * (1.0 - wx) + c1 * wx


def _fold_bn(w, gamma, beta, mean, var, eps=BN_EPS):
    """Fold eval-mode BN into a bias-free 1x1 conv given as (Cin, Cout)."""
    scale = gamma / jnp.sqrt(var + eps)
    return w * scale[None, :], beta - mean * scale


def init_params(key):
    ks = jax.random.split(key, 16)

    def conv_w(k, cin, cout, s=0.05):
        return (s * jax.random.normal(k, (cin, cout))).astype(jnp.float32)

    def bn(k, c):
        k1, k2, k3, k4 = jax.random.split(k, 4)
        gamma = 1.0 + 0.1 * jax.random.normal(k1, (c,))
        beta = 0.05 * jax.random.normal(k2, (c,))
        mean = 0.02 * jax.random.normal(k3, (c,))
        var = 1.0 + 0.1 * jnp.abs(jax.random.normal(k4, (c,)))
        return (gamma.astype(jnp.float32), beta.astype(jnp.float32),
                mean.astype(jnp.float32), var.astype(jnp.float32))

    # conv2: 256 -> 48 (no bias) + BN(48)
    w2 = conv_w(ks[0], C_XL, C_MID)
    w2f, b2f = _fold_bn(w2, *bn(ks[1], C_MID))
    # conv3 stage 1: 108 -> 256 (no bias) + BN(256)
    w3a = conv_w(ks[2], C_XP + C_MID, C_HID)
    w3af, b3af = _fold_bn(w3a, *bn(ks[3], C_HID))
    # conv3 stage 2: 256 -> 256 (no bias) + BN(256)
    w3b = conv_w(ks[4], C_HID, C_HID)
    w3bf, b3bf = _fold_bn(w3b, *bn(ks[5], C_HID))
    # conv6/7/8 (with bias)
    w6 = conv_w(ks[6], C_HID, CLS_P)
    b6 = (0.05 * jax.random.normal(ks[7], (CLS_P,))).astype(jnp.float32)
    w7 = conv_w(ks[8], C_XH, CLS_H)
    b7 = (0.05 * jax.random.normal(ks[9], (CLS_H,))).astype(jnp.float32)
    w8 = conv_w(ks[10], C_XF, CLS_F)
    b8 = (0.05 * jax.random.normal(ks[11], (CLS_F,))).astype(jnp.float32)
    alpha = jnp.ones((1,), jnp.float32)  # nn.Parameter(torch.ones(1)); unused in forward

    return dict(
        w2f=w2f, b2f=b2f,
        w3a_p=w3af[:C_XP], w3a_l=w3af[C_XP:], b3af=b3af,   # split for concat-free matmul
        w3bf=w3bf, b3bf=b3bf,
        w6=w6, b6=b6, w7=w7, b7=b7, w8=w8, b8=b8, alpha=alpha,
    )


def final_decoder_forward(params, xp, xh, xf, xl):
    n, _, th, tw = xl.shape
    # TODO(synk): move the align_corners bilinear gather of xp into the fused
    # kernel (scalar-prefetch y0/y1/x0/x1 tables + resident low-res xp) to
    # avoid materializing the (N,60,th,tw) bf16 upsample in HBM.
    xp_up = _bilinear_align_corners(xp, th, tw).astype(jnp.bfloat16)
    xp_cm = xp_up.reshape(n, C_XP, th * tw)      # NCHW channel-major flatten (view)
    xl_cm = xl.reshape(n, C_XL, th * tw)         # f32, cast to bf16 inside the kernel

    seg_p = fused_seg_p(xp_cm, xl_cm, params).reshape(n, CLS_P, th, tw)
    seg_h = _pw_head_xla(xh, params["w7"], params["b7"])
    seg_f = _pw_head_xla(xf, params["w8"], params["b8"])
    return seg_p, seg_h, seg_f


# Pure-JAX reference for validation -------------------------------------------
def _reference_forward(params, xp, xh, xf, xl):
    hi = jax.lax.Precision.HIGHEST
    xp_up = _bilinear_align_corners(xp, *xl.shape[2:])

    def pw(x_nchw, w, b):
        y = jnp.einsum("nchw,cd->ndhw", x_nchw, w, precision=hi)
        return y + b[None, :, None, None]

    y48 = jnp.maximum(pw(xl, params["w2f"], params["b2f"]), 0.0)
    h1 = jnp.maximum(
        pw(xp_up, params["w3a_p"], jnp.zeros_like(params["b3af"]))
        + pw(y48, params["w3a_l"], params["b3af"]), 0.0)
    h2 = jnp.maximum(pw(h1, params["w3bf"], params["b3bf"]), 0.0)
    seg_p = pw(h2, params["w6"], params["b6"])
    seg_h = pw(xh, params["w7"], params["b7"])
    seg_f = pw(xf, params["w8"], params["b8"])
    return seg_p, seg_h, seg_f


if __name__ == "__main__":
    key = jax.random.PRNGKey(0)
    k_par, k_xp, k_xh, k_xf, k_xl = jax.random.split(key, 5)

    N, TH, TW = 2, 16, 16
    xp = jax.random.normal(k_xp, (N, C_XP, 8, 8), jnp.float32)     # low-res features
    xh = jax.random.normal(k_xh, (N, C_XH, TH, TW), jnp.float32)
    xf = jax.random.normal(k_xf, (N, C_XF, TH, TW), jnp.float32)
    xl = jax.random.normal(k_xl, (N, C_XL, TH, TW), jnp.float32)

    params = init_params(k_par)

    fwd = jax.jit(final_decoder_forward)
    seg_p, seg_h, seg_f = fwd(params, xp, xh, xf, xl)
    jax.block_until_ready((seg_p, seg_h, seg_f))

    assert seg_p.shape == (N, CLS_P, TH, TW)
    assert seg_h.shape == (N, CLS_H, TH, TW)
    assert seg_f.shape == (N, CLS_F, TH, TW)

    ref_p, ref_h, ref_f = _reference_forward(params, xp, xh, xf, xl)
    # seg_p tolerance covers bf16 MXU operands (f32 accumulation) in the fused kernel;
    # heads use default-precision XLA einsums vs the HIGHEST-precision reference.
    np.testing.assert_allclose(np.asarray(seg_p), np.asarray(ref_p), atol=3e-2, rtol=3e-2)
    np.testing.assert_allclose(np.asarray(seg_h), np.asarray(ref_h), atol=1e-2, rtol=1e-2)
    np.testing.assert_allclose(np.asarray(seg_f), np.asarray(ref_f), atol=1e-2, rtol=1e-2)

    print("KERNEL_OK")
</pallas_src>

<mosaic_0001>
module attributes {stable_mosaic.version = 11 : i64} {
  func.func @_fused_segp_kernel(%arg0: i32, %arg1: i32, %arg2: memref<1x60x256xbf16, #tpu.memory_space<vmem>>, %arg3: memref<1x256x256xf32, #tpu.memory_space<vmem>>, %arg4: memref<48x256xbf16, #tpu.memory_space<vmem>>, %arg5: memref<48x1xf32, #tpu.memory_space<vmem>>, %arg6: memref<256x60xbf16, #tpu.memory_space<vmem>>, %arg7: memref<256x48xbf16, #tpu.memory_space<vmem>>, %arg8: memref<256x1xf32, #tpu.memory_space<vmem>>, %arg9: memref<256x256xbf16, #tpu.memory_space<vmem>>, %arg10: memref<256x1xf32, #tpu.memory_space<vmem>>, %arg11: memref<7x256xbf16, #tpu.memory_space<vmem>>, %arg12: memref<7x1xf32, #tpu.memory_space<vmem>>, %arg13: memref<1x7x256xf32, #tpu.memory_space<vmem>>) attributes {dimension_semantics = [#tpu.dimension_semantics<parallel>, #tpu.dimension_semantics<parallel>], iteration_bounds = array<i64: 2, 1>, scalar_prefetch = 0 : i64, scratch_operands = 0 : i64, tpu.core_type = #tpu.core_type<tc>, window_params = [{transform_indices = @transform_0, window_bounds = array<i64: 1, 60, 256>}, {transform_indices = @transform_1, window_bounds = array<i64: 1, 256, 256>}, {pipeline_mode = #tpu.pipeline_mode<synchronous>, transform_indices = @transform_2, window_bounds = array<i64: 48, 256>}, {pipeline_mode = #tpu.pipeline_mode<synchronous>, transform_indices = @transform_3, window_bounds = array<i64: 48, 1>}, {pipeline_mode = #tpu.pipeline_mode<synchronous>, transform_indices = @transform_4, window_bounds = array<i64: 256, 60>}, {pipeline_mode = #tpu.pipeline_mode<synchronous>, transform_indices = @transform_5, window_bounds = array<i64: 256, 48>}, {pipeline_mode = #tpu.pipeline_mode<synchronous>, transform_indices = @transform_6, window_bounds = array<i64: 256, 1>}, {pipeline_mode = #tpu.pipeline_mode<synchronous>, transform_indices = @transform_7, window_bounds = array<i64: 256, 256>}, {pipeline_mode = #tpu.pipeline_mode<synchronous>, transform_indices = @transform_8, window_bounds = array<i64: 256, 1>}, {pipeline_mode = #tpu.pipeline_mode<synchronous>, transform_indices = @transform_9, window_bounds = array<i64: 7, 256>}, {pipeline_mode = #tpu.pipeline_mode<synchronous>, transform_indices = @transform_10, window_bounds = array<i64: 7, 1>}, {transform_indices = @transform_11, window_bounds = array<i64: 1, 7, 256>}]} {
    %c0 = arith.constant 0 : index
    %c0_0 = arith.constant 0 : index
    %c0_1 = arith.constant 0 : index
    %0 = vector.load %arg3[%c0, %c0_0, %c0_1] : memref<1x256x256xf32, #tpu.memory_space<vmem>>, vector<1x256x256xf32>
    %1 = vector.shape_cast %0 : vector<1x256x256xf32> to vector<256x256xf32>
    %2 = arith.truncf %1 : vector<256x256xf32> to vector<256x256xbf16>
    %c0_2 = arith.constant 0 : index
    %c0_3 = arith.constant 0 : index
    %c0_4 = arith.constant 0 : index
    %3 = vector.load %arg2[%c0_2, %c0_3, %c0_4] : memref<1x60x256xbf16, #tpu.memory_space<vmem>>, vector<1x60x256xbf16>
    %4 = vector.shape_cast %3 : vector<1x60x256xbf16> to vector<60x256xbf16>
    %c0_5 = arith.constant 0 : index
    %c0_6 = arith.constant 0 : index
    %5 = vector.load %arg4[%c0_5, %c0_6] : memref<48x256xbf16, #tpu.memory_space<vmem>>, vector<48x256xbf16>
    %cst = arith.constant dense<0.000000e+00> : vector<48x256xf32>
    %6 = tpu.matmul %5, %2, %cst {dimension_numbers = #tpu.dot_dimension_numbers<[1], [0], [0], [1], [0, 0, 1, 1], [], []>} : vector<48x256xbf16>, vector<256x256xbf16>, vector<48x256xf32> -> vector<48x256xf32>
    %c0_7 = arith.constant 0 : index
    %c0_8 = arith.constant 0 : index
    %7 = vector.load %arg5[%c0_7, %c0_8] : memref<48x1xf32, #tpu.memory_space<vmem>>, vector<48x1xf32>
    %8 = vector.broadcast %7 : vector<48x1xf32> to vector<48x256xf32>
    %9 = arith.addf %6, %8 : vector<48x256xf32>
    %cst_9 = arith.constant 0.000000e+00 : f32
    %10 = vector.broadcast %cst_9 : f32 to vector<48x256xf32>
    %11 = arith.maximumf %9, %10 : vector<48x256xf32>
    %c0_10 = arith.constant 0 : index
    %c0_11 = arith.constant 0 : index
    %12 = vector.load %arg6[%c0_10, %c0_11] : memref<256x60xbf16, #tpu.memory_space<vmem>>, vector<256x60xbf16>
    %cst_12 = arith.constant dense<0.000000e+00> : vector<256x256xf32>
    %13 = tpu.matmul %12, %4, %cst_12 {dimension_numbers = #tpu.dot_dimension_numbers<[1], [0], [0], [1], [0, 0, 1, 1], [], []>} : vector<256x60xbf16>, vector<60x256xbf16>, vector<256x256xf32> -> vector<256x256xf32>
    %c0_13 = arith.constant 0 : index
    %c0_14 = arith.constant 0 : index
    %14 = vector.load %arg7[%c0_13, %c0_14] : memref<256x48xbf16, #tpu.memory_space<vmem>>, vector<256x48xbf16>
    %15 = arith.truncf %11 : vector<48x256xf32> to vector<48x256xbf16>
    %cst_15 = arith.constant dense<0.000000e+00> : vector<256x256xf32>
    %16 = tpu.matmul %14, %15, %cst_15 {dimension_numbers = #tpu.dot_dimension_numbers<[1], [0], [0], [1], [0, 0, 1, 1], [], []>} : vector<256x48xbf16>, vector<48x256xbf16>, vector<256x256xf32> -> vector<256x256xf32>
    %17 = arith.addf %13, %16 : vector<256x256xf32>
    %c0_16 = arith.constant 0 : index
    %c0_17 = arith.constant 0 : index
    %18 = vector.load %arg8[%c0_16, %c0_17] : memref<256x1xf32, #tpu.memory_space<vmem>>, vector<256x1xf32>
    %19 = vector.broadcast %18 : vector<256x1xf32> to vector<256x256xf32>
    %20 = arith.addf %17, %19 : vector<256x256xf32>
    %cst_18 = arith.constant 0.000000e+00 : f32
    %21 = vector.broadcast %cst_18 : f32 to vector<256x256xf32>
    %22 = arith.maximumf %20, %21 : vector<256x256xf32>
    %c0_19 = arith.constant 0 : index
    %c0_20 = arith.constant 0 : index
    %23 = vector.load %arg9[%c0_19, %c0_20] : memref<256x256xbf16, #tpu.memory_space<vmem>>, vector<256x256xbf16>
    %24 = arith.truncf %22 : vector<256x256xf32> to vector<256x256xbf16>
    %cst_21 = arith.constant dense<0.000000e+00> : vector<256x256xf32>
    %25 = tpu.matmul %23, %24, %cst_21 {dimension_numbers = #tpu.dot_dimension_numbers<[1], [0], [0], [1], [0, 0, 1, 1], [], []>} : vector<256x256xbf16>, vector<256x256xbf16>, vector<256x256xf32> -> vector<256x256xf32>
    %c0_22 = arith.constant 0 : index
    %c0_23 = arith.constant 0 : index
    %26 = vector.load %arg10[%c0_22, %c0_23] : memref<256x1xf32, #tpu.memory_space<vmem>>, vector<256x1xf32>
    %27 = vector.broadcast %26 : vector<256x1xf32> to vector<256x256xf32>
    %28 = arith.addf %25, %27 : vector<256x256xf32>
    %cst_24 = arith.constant 0.000000e+00 : f32
    %29 = vector.broadcast %cst_24 : f32 to vector<256x256xf32>
    %30 = arith.maximumf %28, %29 : vector<256x256xf32>
    %c0_25 = arith.constant 0 : index
    %c0_26 = arith.constant 0 : index
    %31 = vector.load %arg11[%c0_25, %c0_26] : memref<7x256xbf16, #tpu.memory_space<vmem>>, vector<7x256xbf16>
    %32 = arith.truncf %30 : vector<256x256xf32> to vector<256x256xbf16>
    %cst_27 = arith.constant dense<0.000000e+00> : vector<7x256xf32>
    %33 = tpu.matmul %31, %32, %cst_27 {dimension_numbers = #tpu.dot_dimension_numbers<[1], [0], [0], [1], [0, 0, 1, 1], [], []>} : vector<7x256xbf16>, vector<256x256xbf16>, vector<7x256xf32> -> vector<7x256xf32>
    %c0_28 = arith.constant 0 : index
    %c0_29 = arith.constant 0 : index
    %34 = vector.load %arg12[%c0_28, %c0_29] : memref<7x1xf32, #tpu.memory_space<vmem>>, vector<7x1xf32>
    %35 = vector.broadcast %34 : vector<7x1xf32> to vector<7x256xf32>
    %36 = arith.addf %33, %35 : vector<7x256xf32>
    %c0_30 = arith.constant 0 : index
    %c0_31 = arith.constant 0 : index
    %c0_32 = arith.constant 0 : index
    %37 = vector.load %arg13[%c0_30, %c0_31, %c0_32] : memref<1x7x256xf32, #tpu.memory_space<vmem>>, vector<1x7x256xf32>
    %38 = vector.shape_cast %37 : vector<1x7x256xf32> to vector<7x256xf32>
    %39 = vector.shape_cast %36 : vector<7x256xf32> to vector<1x7x256xf32>
    tpu.vector_store %arg13[%c0_30, %c0_31, %c0_32], %39 {strides = array<i32>} : memref<1x7x256xf32, #tpu.memory_space<vmem>>, vector<1x7x256xf32>,
    return
  }
  func.func @transform_0(%arg0: i32, %arg1: i32) -> (i32, i32, i32) {
    %c0_i32 = arith.constant 0 : i32
    %c0_i32_0 = arith.constant 0 : i32
    return %arg0, %c0_i32, %arg1 : i32, i32, i32
  }
  func.func @transform_1(%arg0: i32, %arg1: i32) -> (i32, i32, i32) {
    %c0_i32 = arith.constant 0 : i32
    %c0_i32_0 = arith.constant 0 : i32
    return %arg0, %c0_i32, %arg1 : i32, i32, i32
  }
  func.func @transform_2(%arg0: i32, %arg1: i32) -> (i32, i32) {
    %c0_i32 = arith.constant 0 : i32
    %c0_i32_0 = arith.constant 0 : i32
    %c0_i32_1 = arith.constant 0 : i32
    return %c0_i32, %c0_i32_0 : i32, i32
  }
  func.func @transform_3(%arg0: i32, %arg1: i32) -> (i32, i32) {
    %c0_i32 = arith.constant 0 : i32
    %c0_i32_0 = arith.constant 0 : i32
    %c0_i32_1 = arith.constant 0 : i32
    return %c0_i32, %c0_i32_0 : i32, i32
  }
  func.func @transform_4(%arg0: i32, %arg1: i32) -> (i32, i32) {
    %c0_i32 = arith.constant 0 : i32
    %c0_i32_0 = arith.constant 0 : i32
    %c0_i32_1 = arith.constant 0 : i32
    return %c0_i32, %c0_i32_0 : i32, i32
  }
  func.func @transform_5(%arg0: i32, %arg1: i32) -> (i32, i32) {
    %c0_i32 = arith.constant 0 : i32
    %c0_i32_0 = arith.constant 0 : i32
    %c0_i32_1 = arith.constant 0 : i32
    return %c0_i32, %c0_i32_0 : i32, i32
  }
  func.func @transform_6(%arg0: i32, %arg1: i32) -> (i32, i32) {
    %c0_i32 = arith.constant 0 : i32
    %c0_i32_0 = arith.constant 0 : i32
    %c0_i32_1 = arith.constant 0 : i32
    return %c0_i32, %c0_i32_0 : i32, i32
  }
  func.func @transform_7(%arg0: i32, %arg1: i32) -> (i32, i32) {
    %c0_i32 = arith.constant 0 : i32
    %c0_i32_0 = arith.constant 0 : i32
    %c0_i32_1 = arith.constant 0 : i32
    return %c0_i32, %c0_i32_0 : i32, i32
  }
  func.func @transform_8(%arg0: i32, %arg1: i32) -> (i32, i32) {
    %c0_i32 = arith.constant 0 : i32
    %c0_i32_0 = arith.constant 0 : i32
    %c0_i32_1 = arith.constant 0 : i32
    return %c0_i32, %c0_i32_0 : i32, i32
  }
  func.func @transform_9(%arg0: i32, %arg1: i32) -> (i32, i32) {
    %c0_i32 = arith.constant 0 : i32
    %c0_i32_0 = arith.constant 0 : i32
    %c0_i32_1 = arith.constant 0 : i32
    return %c0_i32, %c0_i32_0 : i32, i32
  }
  func.func @transform_10(%arg0: i32, %arg1: i32) -> (i32, i32) {
    %c0_i32 = arith.constant 0 : i32
    %c0_i32_0 = arith.constant 0 : i32
    %c0_i32_1 = arith.constant 0 : i32
    return %c0_i32, %c0_i32_0 : i32, i32
  }
  func.func @transform_11(%arg0: i32, %arg1: i32) -> (i32, i32, i32) {
    %c0_i32 = arith.constant 0 : i32
    %c0_i32_0 = arith.constant 0 : i32
    return %arg0, %c0_i32, %arg1 : i32, i32, i32
  }
}

</mosaic_0001>

<llo_original>
// kernel: final_decoder_forward.1
$region0: #{final_decoder_forward.1}
  #allocation0 [shape = 'u32[]', space=smem, size = 0x4, offset = 0x4, fixed_abs, tag = 'smem constant byte address 0x4 - core index']
  #allocation1 [shape = 'u32[144,128]{1,0:T(1,128)}', space=vmem, size = 0x12000, scoped, tag = 'internal scratch']
  %s0 = inlined_call_operand.vmem [shape: bf16[2,60,256], index: 0, kind: input, shape index: {}]
  %s1 = inlined_call_operand.vmem [shape: f32[2,256,256], index: 1, kind: input, shape index: {}]
  %s2 = inlined_call_operand.vmem [shape: bf16[48,256], index: 2, kind: input, shape index: {}]
  %s3 = inlined_call_operand.vmem [shape: f32[48,1], index: 3, kind: input, shape index: {}]
  %s4 = inlined_call_operand.vmem [shape: bf16[256,60], index: 4, kind: input, shape index: {}]
  %s5 = inlined_call_operand.vmem [shape: bf16[256,48], index: 5, kind: input, shape index: {}]
  %s6 = inlined_call_operand.vmem [shape: f32[256,1], index: 6, kind: input, shape index: {}]
  %s7 = inlined_call_operand.vmem [shape: bf16[256,256], index: 7, kind: input, shape index: {}]
  %s8 = inlined_call_operand.vmem [shape: f32[256,1], index: 8, kind: input, shape index: {}]
  %s9 = inlined_call_operand.vmem [shape: bf16[7,256], index: 9, kind: input, shape index: {}]
  %s10 = inlined_call_operand.vmem [shape: f32[7,1], index: 10, kind: input, shape index: {}]
  %s11 = inlined_call_operand.vmem [shape: f32[2,7,256], index: 11, kind: output, shape index: {}]
  %s12 = sld [smem:[#allocation0]]
  $region77: #{final_decoder_forward.1} parent=0
    _
  %s14 = ssub.s32 1, %s12
  %s15 = scalar_select 0, %s14, %s12
  loop: start=0, step=1, limit=4
  $region2: #{final_decoder_forward.1} parent=0 // loop_pre_header
    _
  $region3: #{final_decoder_forward.1} parent=0 // loop_header
    %s17 = sphi 0, %s21
    %p18 = scmp.ge.s32.totalorder %s17, 4
    %s24 = sphi 0, %s36
    %s25 = sphi 0, %s32
    %s26 = sphi 0, %s24
    %s27 = sphi 0, %s25
    %s28 = sphi 0, %s26
    %s29 = sphi 0, %s27
    %s41 = sphi 0, %s43
    %s44 = sphi 0, %s41
    %s45 = sphi 0, %s44
    %s61 = sphi 0, %s45
    %s69 = sphi 0, %s71
    %s72 = sphi 0, %s69
    %s73 = sphi 0, %s72
    %s89 = sphi 0, %s73
    %s93 = sphi 0, %s93
    %s95 = sphi 0, %s93
    %s96 = sphi 0, %s95
    %s110 = sphi 0, %s96
    %s114 = sphi 0, %s114
    %s116 = sphi 0, %s114
    %s117 = sphi 0, %s116
    %s131 = sphi 0, %s117
    %s135 = sphi 0, %s135
    %s137 = sphi 0, %s135
    %s138 = sphi 0, %s137
    %s152 = sphi 0, %s138
    %s156 = sphi 0, %s156
    %s158 = sphi 0, %s156
    %s159 = sphi 0, %s158
    %s173 = sphi 0, %s159
    %s177 = sphi 0, %s177
    %s179 = sphi 0, %s177
    %s180 = sphi 0, %s179
    %s194 = sphi 0, %s180
    %s198 = sphi 0, %s198
    %s200 = sphi 0, %s198
    %s201 = sphi 0, %s200
    %s215 = sphi 0, %s201
    %s219 = sphi 0, %s219
    %s221 = sphi 0, %s219
    %s222 = sphi 0, %s221
    %s236 = sphi 0, %s222
    %s240 = sphi 0, %s240
    %s242 = sphi 0, %s240
    %s243 = sphi 0, %s242
    %s257 = sphi 0, %s243
    %s261 = sphi 0, %s261
    %s263 = sphi 0, %s261
    %s264 = sphi 0, %s263
    %s278 = sphi 0, %s264
    %s286 = sphi 0, %s288
    %s289 = sphi 0, %s286
    %s290 = sphi 0, %s289
    %s306 = sphi 0, %s290
  $region4: #{final_decoder_forward.1} parent=0 // loop_header_branch
    %20 = sbr.rel (%p18) target = $region8
  $region5: #{final_decoder_forward.1} parent=0 // loop_body
    %s22 = ssub.s32 %s17, 1
    %s23 = ssub.s32 %s17, 2
    %s30 = sadd.s32 1, %s25
    %p31 = scmp.ge.s32.totalorder %s30, 1
    %s32 = scalar_select %p31, 0, %s30
    %s33 = sadd.s32 1, %s24
    %s34 = scalar_select %p31, %s33, %s24
    %p35 = scmp.ge.s32.totalorder %s34, 2
    %s36 = scalar_select %p35, 0, %s34
    %s37 = ssub.s32 %s24, %s36
    %s38 = ssub.s32 %s25, %s32
    %s39 = sor.u32 %s37, %s38
    %p40 = scmp.eq.s32.totalorder %s39, 0
    %s42 = sadd.s32 %s41, 1
    %s43 = scalar_select %p40, %s41, %s42
    %p46 = pneg %p40
    %p47 = scmp.eq.s32.totalorder %s17, 1
    %p48 = por %p46, %p47
    %p49 = scmp.ne.s32.totalorder %s41, %s44
    %p50 = scmp.eq.s32.totalorder %s17, 0
    %p51 = por %p49, %p50
    %p52 = scmp.ne.s32.totalorder %s41, %s44
    %p53 = scmp.eq.s32.totalorder %s22, 1
    %p54 = por %p52, %p53
    %p55 = scmp.ne.s32.totalorder %s44, %s45
    %p56 = scmp.eq.s32.totalorder %s22, 0
    %p57 = por %p55, %p56
    %p58 = scmp.ne.s32.totalorder %s44, %s45
    %p59 = scmp.eq.s32.totalorder %s23, 1
    %p60 = por %p58, %p59
    %p62 = scmp.ne.s32.totalorder %s45, %s61
    %p63 = scmp.eq.s32.totalorder %s23, 0
    %p64 = por %p62, %p63
    %s65 = ssub.s32 %s24, %s36
    %s66 = ssub.s32 %s25, %s32
    %s67 = sor.u32 %s65, %s66
    %p68 = scmp.eq.s32.totalorder %s67, 0
    %s70 = sadd.s32 %s69, 1
    %s71 = scalar_select %p68, %s69, %s70
    %p74 = pneg %p68
    %p75 = scmp.eq.s32.totalorder %s17, 1
    %p76 = por %p74, %p75
    %p77 = scmp.ne.s32.totalorder %s69, %s72
    %p78 = scmp.eq.s32.totalorder %s17, 0
    %p79 = por %p77, %p78
    %p80 = scmp.ne.s32.totalorder %s69, %s72
    %p81 = scmp.eq.s32.totalorder %s22, 1
    %p82 = por %p80, %p81
    %p83 = scmp.ne.s32.totalorder %s72, %s73
    %p84 = scmp.eq.s32.totalorder %s22, 0
    %p85 = por %p83, %p84
    %p86 = scmp.ne.s32.totalorder %s72, %s73
    %p87 = scmp.eq.s32.totalorder %s23, 1
    %p88 = por %p86, %p87
    %p90 = scmp.ne.s32.totalorder %s73, %s89
    %p91 = scmp.eq.s32.totalorder %s23, 0
    %p92 = por %p90, %p91
    %s94 = sadd.s32 %s93, 1
    %p97 = scmp.eq.s32.totalorder %s17, 1
    %p98 = scmp.ne.s32.totalorder %s93, %s95
    %p99 = scmp.eq.s32.totalorder %s17, 0
    %p100 = por %p98, %p99
    %p101 = scmp.ne.s32.totalorder %s93, %s95
    %p102 = scmp.eq.s32.totalorder %s22, 1
    %p103 = por %p101, %p102
    %p104 = scmp.ne.s32.totalorder %s95, %s96
    %p105 = scmp.eq.s32.totalorder %s22, 0
    %p106 = por %p104, %p105
    %p107 = scmp.ne.s32.totalorder %s95, %s96
    %p108 = scmp.eq.s32.totalorder %s23, 1
    %p109 = por %p107, %p108
    %p111 = scmp.ne.s32.totalorder %s96, %s110
    %p112 = scmp.eq.s32.totalorder %s23, 0
    %p113 = por %p111, %p112
    %s115 = sadd.s32 %s114, 1
    %p118 = scmp.eq.s32.totalorder %s17, 1
    %p119 = scmp.ne.s32.totalorder %s114, %s116
    %p120 = scmp.eq.s32.totalorder %s17, 0
    %p121 = por %p119, %p120
    %p122 = scmp.ne.s32.totalorder %s114, %s116
    %p123 = scmp.eq.s32.totalorder %s22, 1
    %p124 = por %p122, %p123
    %p125 = scmp.ne.s32.totalorder %s116, %s117
    %p126 = scmp.eq.s32.totalorder %s22, 0
    %p127 = por %p125, %p126
    %p128 = scmp.ne.s32.totalorder %s116, %s117
    %p129 = scmp.eq.s32.totalorder %s23, 1
    %p130 = por %p128, %p129
    %p132 = scmp.ne.s32.totalorder %s117, %s131
    %p133 = scmp.eq.s32.totalorder %s23, 0
    %p134 = por %p132, %p133
    %s136 = sadd.s32 %s135, 1
    %p139 = scmp.eq.s32.totalorder %s17, 1
    %p140 = scmp.ne.s32.totalorder %s135, %s137
    %p141 = scmp.eq.s32.totalorder %s17, 0
    %p142 = por %p140, %p141
    %p143 = scmp.ne.s32.totalorder %s135, %s137
    %p144 = scmp.eq.s32.totalorder %s22, 1
    %p145 = por %p143, %p144
    %p146 = scmp.ne.s32.totalorder %s137, %s138
    %p147 = scmp.eq.s32.totalorder %s22, 0
    %p148 = por %p146, %p147
    %p149 = scmp.ne.s32.totalorder %s137, %s138
    %p150 = scmp.eq.s32.totalorder %s23, 1
    %p151 = por %p149, %p150
    %p153 = scmp.ne.s32.totalorder %s138, %s152
    %p154 = scmp.eq.s32.totalorder %s23, 0
    %p155 = por %p153, %p154
    %s157 = sadd.s32 %s156, 1
    %p160 = scmp.eq.s32.totalorder %s17, 1
    %p161 = scmp.ne.s32.totalorder %s156, %s158
    %p162 = scmp.eq.s32.totalorder %s17, 0
    %p163 = por %p161, %p162
    %p164 = scmp.ne.s32.totalorder %s156, %s158
    %p165 = scmp.eq.s32.totalorder %s22, 1
    %p166 = por %p164, %p165
    %p167 = scmp.ne.s32.totalorder %s158, %s159
    %p168 = scmp.eq.s32.totalorder %s22, 0
    %p169 = por %p167, %p168
    %p170 = scmp.ne.s32.totalorder %s158, %s159
    %p171 = scmp.eq.s32.totalorder %s23, 1
    %p172 = por %p170, %p171
    %p174 = scmp.ne.s32.totalorder %s159, %s173
    %p175 = scmp.eq.s32.totalorder %s23, 0
    %p176 = por %p174, %p175
    %s178 = sadd.s32 %s177, 1
    %p181 = scmp.eq.s32.totalorder %s17, 1
    %p182 = scmp.ne.s32.totalorder %s177, %s179
    %p183 = scmp.eq.s32.totalorder %s17, 0
    %p184 = por %p182, %p183
    %p185 = scmp.ne.s32.totalorder %s177, %s179
    %p186 = scmp.eq.s32.totalorder %s22, 1
    %p187 = por %p185, %p186
    %p188 = scmp.ne.s32.totalorder %s179, %s180
    %p189 = scmp.eq.s32.totalorder %s22, 0
    %p190 = por %p188, %p189
    %p191 = scmp.ne.s32.totalorder %s179, %s180
    %p192 = scmp.eq.s32.totalorder %s23, 1
    %p193 = por %p191, %p192
    %p195 = scmp.ne.s32.totalorder %s180, %s194
    %p196 = scmp.eq.s32.totalorder %s23, 0
    %p197 = por %p195, %p196
    %s199 = sadd.s32 %s198, 1
    %p202 = scmp.eq.s32.totalorder %s17, 1
    %p203 = scmp.ne.s32.totalorder %s198, %s200
    %p204 = scmp.eq.s32.totalorder %s17, 0
    %p205 = por %p203, %p204
    %p206 = scmp.ne.s32.totalorder %s198, %s200
    %p207 = scmp.eq.s32.totalorder %s22, 1
    %p208 = por %p206, %p207
    %p209 = scmp.ne.s32.totalorder %s200, %s201
    %p210 = scmp.eq.s32.totalorder %s22, 0
    %p211 = por %p209, %p210
    %p212 = scmp.ne.s32.totalorder %s200, %s201
    %p213 = scmp.eq.s32.totalorder %s23, 1
    %p214 = por %p212, %p213
    %p216 = scmp.ne.s32.totalorder %s201, %s215
    %p217 = scmp.eq.s32.totalorder %s23, 0
    %p218 = por %p216, %p217
    %s220 = sadd.s32 %s219, 1
    %p223 = scmp.eq.s32.totalorder %s17, 1
    %p224 = scmp.ne.s32.totalorder %s219, %s221
    %p225 = scmp.eq.s32.totalorder %s17, 0
    %p226 = por %p224, %p225
    %p227 = scmp.ne.s32.totalorder %s219, %s221
    %p228 = scmp.eq.s32.totalorder %s22, 1
    %p229 = por %p227, %p228
    %p230 = scmp.ne.s32.totalorder %s221, %s222
    %p231 = scmp.eq.s32.totalorder %s22, 0
    %p232 = por %p230, %p231
    %p233 = scmp.ne.s32.totalorder %s221, %s222
    %p234 = scmp.eq.s32.totalorder %s23, 1
    %p235 = por %p233, %p234
    %p237 = scmp.ne.s32.totalorder %s222, %s236
    %p238 = scmp.eq.s32.totalorder %s23, 0
    %p239 = por %p237, %p238
    %s241 = sadd.s32 %s240, 1
    %p244 = scmp.eq.s32.totalorder %s17, 1
    %p245 = scmp.ne.s32.totalorder %s240, %s242
    %p246 = scmp.eq.s32.totalorder %s17, 0
    %p247 = por %p245, %p246
    %p248 = scmp.ne.s32.totalorder %s240, %s242
    %p249 = scmp.eq.s32.totalorder %s22, 1
    %p250 = por %p248, %p249
    %p251 = scmp.ne.s32.totalorder %s242, %s243
    %p252 = scmp.eq.s32.totalorder %s22, 0
    %p253 = por %p251, %p252
    %p254 = scmp.ne.s32.totalorder %s242, %s243
    %p255 = scmp.eq.s32.totalorder %s23, 1
    %p256 = por %p254, %p255
    %p258 = scmp.ne.s32.totalorder %s243, %s257
    %p259 = scmp.eq.s32.totalorder %s23, 0
    %p260 = por %p258, %p259
    %s262 = sadd.s32 %s261, 1
    %p265 = scmp.eq.s32.totalorder %s17, 1
    %p266 = scmp.ne.s32.totalorder %s261, %s263
    %p267 = scmp.eq.s32.totalorder %s17, 0
    %p268 = por %p266, %p267
    %p269 = scmp.ne.s32.totalorder %s261, %s263
    %p270 = scmp.eq.s32.totalorder %s22, 1
    %p271 = por %p269, %p270
    %p272 = scmp.ne.s32.totalorder %s263, %s264
    %p273 = scmp.eq.s32.totalorder %s22, 0
    %p274 = por %p272, %p273
    %p275 = scmp.ne.s32.totalorder %s263, %s264
    %p276 = scmp.eq.s32.totalorder %s23, 1
    %p277 = por %p275, %p276
    %p279 = scmp.ne.s32.totalorder %s264, %s278
    %p280 = scmp.eq.s32.totalorder %s23, 0
    %p281 = por %p279, %p280
    %s282 = ssub.s32 %s24, %s36
    %s283 = ssub.s32 %s25, %s32
    %s284 = sor.u32 %s282, %s283
    %p285 = scmp.eq.s32.totalorder %s284, 0
    %s287 = sadd.s32 %s286, 1
    %s288 = scalar_select %p285, %s286, %s287
    %p291 = pneg %p285
    %p292 = scmp.eq.s32.totalorder %s17, 1
    %p293 = por %p291, %p292
    %p294 = scmp.ne.s32.totalorder %s286, %s289
    %p295 = scmp.eq.s32.totalorder %s17, 0
    %p296 = por %p294, %p295
    %p297 = scmp.ne.s32.totalorder %s286, %s289
    %p298 = scmp.eq.s32.totalorder %s22, 1
    %p299 = por %p297, %p298
    %p300 = scmp.ne.s32.totalorder %s289, %s290
    %p301 = scmp.eq.s32.totalorder %s22, 0
    %p302 = por %p300, %p301
    %p303 = scmp.ne.s32.totalorder %s289, %s290
    %p304 = scmp.eq.s32.totalorder %s23, 1
    %p305 = por %p303, %p304
    %p307 = scmp.ne.s32.totalorder %s290, %s306
    %p308 = scmp.eq.s32.totalorder %s23, 0
    %p309 = por %p307, %p308
    %p310 = scmp.le.s32.totalorder 1, %s17
    %p311 = scmp.lt.s32.totalorder %s17, 3
    %p312 = pnand %p310, %p311
    %p313 = pneg %p312
    // Predicated region
    $region9: #{final_decoder_forward.1} parent=5 // pred_check
      _
    $region10: #{final_decoder_forward.1} parent=5 // pred_check_branch
      %315 = sbr.rel (%p312) target = $region12
    $region11: #{final_decoder_forward.1} parent=5 // pred_region
      %s316 = ssub.s32 %s17, 1
      // Predicated region
      $region13: #{final_decoder_forward.1} parent=11 // pred_check
        %p317 = pneg %p106
      $region14: #{final_decoder_forward.1} parent=11 // pred_check_branch
        %319 = sbr.rel (%p317) target = $region16
      $region15: #{final_decoder_forward.1} parent=11 // pred_region
        _
      $region16: #{final_decoder_forward.1} parent=11 // pred_fallthru
        _
      // Predicated region
      $region17: #{final_decoder_forward.1} parent=11 // pred_check
        %p320 = pneg %p127
      $region18: #{final_decoder_forward.1} parent=11 // pred_check_branch
        %322 = sbr.rel (%p320) target = $region20
      $region19: #{final_decoder_forward.1} parent=11 // pred_region
        _
      $region20: #{final_decoder_forward.1} parent=11 // pred_fallthru
        _
      // Predicated region
      $region21: #{final_decoder_forward.1} parent=11 // pred_check
        %p323 = pneg %p148
      $region22: #{final_decoder_forward.1} parent=11 // pred_check_branch
        %325 = sbr.rel (%p323) target = $region24
      $region23: #{final_decoder_forward.1} parent=11 // pred_region
        _
      $region24: #{final_decoder_forward.1} parent=11 // pred_fallthru
        _
      // Predicated region
      $region25: #{final_decoder_forward.1} parent=11 // pred_check
        %p326 = pneg %p169
      $region26: #{final_decoder_forward.1} parent=11 // pred_check_branch
        %328 = sbr.rel (%p326) target = $region28
      $region27: #{final_decoder_forward.1} parent=11 // pred_region
        _
      $region28: #{final_decoder_forward.1} parent=11 // pred_fallthru
        _
      // Predicated region
      $region29: #{final_decoder_forward.1} parent=11 // pred_check
        %p329 = pneg %p190
      $region30: #{final_decoder_forward.1} parent=11 // pred_check_branch
        %331 = sbr.rel (%p329) target = $region32
      $region31: #{final_decoder_forward.1} parent=11 // pred_region
        _
      $region32: #{final_decoder_forward.1} parent=11 // pred_fallthru
        _
      // Predicated region
      $region33: #{final_decoder_forward.1} parent=11 // pred_check
        %p332 = pneg %p211
      $region34: #{final_decoder_forward.1} parent=11 // pred_check_branch
        %334 = sbr.rel (%p332) target = $region36
      $region35: #{final_decoder_forward.1} parent=11 // pred_region
        _
      $region36: #{final_decoder_forward.1} parent=11 // pred_fallthru
        _
      // Predicated region
      $region37: #{final_decoder_forward.1} parent=11 // pred_check
        %p335 = pneg %p232
      $region38: #{final_decoder_forward.1} parent=11 // pred_check_branch
        %337 = sbr.rel (%p335) target = $region40
      $region39: #{final_decoder_forward.1} parent=11 // pred_region
        _
      $region40: #{final_decoder_forward.1} parent=11 // pred_fallthru
        _
      // Predicated region
      $region41: #{final_decoder_forward.1} parent=11 // pred_check
        %p338 = pneg %p253
      $region42: #{final_decoder_forward.1} parent=11 // pred_check_branch
        %340 = sbr.rel (%p338) target = $region44
      $region43: #{final_decoder_forward.1} parent=11 // pred_region
        _
      $region44: #{final_decoder_forward.1} parent=11 // pred_fallthru
        _
      // Predicated region
      $region45: #{final_decoder_forward.1} parent=11 // pred_check
        %p341 = pneg %p274
      $region46: #{final_decoder_forward.1} parent=11 // pred_check_branch
        %343 = sbr.rel (%p341) target = $region48
      $region47: #{final_decoder_forward.1} parent=11 // pred_region
        _
      $region48: #{final_decoder_forward.1} parent=11 // pred_fallthru
        _
    $region12: #{final_decoder_forward.1} parent=5 // pred_fallthru
      _
    %p344 = scmp.lt.s32.totalorder %s17, 2
    // Predicated region
    $region49: #{final_decoder_forward.1} parent=5 // pred_check
      %p345 = pneg %p344
    $region50: #{final_decoder_forward.1} parent=5 // pred_check_branch
      %347 = sbr.rel (%p345) target = $region52
    $region51: #{final_decoder_forward.1} parent=5 // pred_region
      // Predicated region
      $region53: #{final_decoder_forward.1} parent=51 // pred_check
        %p348 = pneg %p51
      $region54: #{final_decoder_forward.1} parent=51 // pred_check_branch
        %350 = sbr.rel (%p348) target = $region56
      $region55: #{final_decoder_forward.1} parent=51 // pred_region
        %s351 = smul.u32 2, %s25
        %p352 = scmp.lt.s32.totalorder %s24, 1
        %s353 = scalar_select %p352, %s24, 1
        %p354 = scmp.lt.s32.totalorder %s351, 1
        %s355 = scalar_select %p354, %s351, 1
        %s356 = smul.addr %s353, 16
        %s357 = sadd.s32 %s355, %s356
        %s358 = smul.addr %s357, 4
        %s359 = scalar_lea.vmem %s0, %s358
        %s360 = smul.u32 2, %s25
      $region56: #{final_decoder_forward.1} parent=51 // pred_fallthru
        _
      // Predicated region
      $region57: #{final_decoder_forward.1} parent=51 // pred_check
        %p361 = pneg %p79
      $region58: #{final_decoder_forward.1} parent=51 // pred_check_branch
        %363 = sbr.rel (%p361) target = $region60
      $region59: #{final_decoder_forward.1} parent=51 // pred_region
        %s364 = smul.u32 2, %s25
        %p365 = scmp.lt.s32.totalorder %s24, 1
        %s366 = scalar_select %p365, %s24, 1
        %p367 = scmp.lt.s32.totalorder %s364, 1
        %s368 = scalar_select %p367, %s364, 1
        %s369 = smul.addr %s366, 64
        %s370 = sadd.s32 %s368, %s369
        %s371 = smul.addr %s370, 8
        %s372 = scalar_lea.vmem %s1, %s371
        %s373 = smul.u32 2, %s25
      $region60: #{final_decoder_forward.1} parent=51 // pred_fallthru
        _
    $region52: #{final_decoder_forward.1} parent=5 // pred_fallthru
      _
    %p374 = scmp.le.s32.totalorder 1, %s17
    %p375 = scmp.lt.s32.totalorder %s17, 3
    %p376 = pnand %p374, %p375
    %p377 = pneg %p376
    // Predicated region
    $region61: #{final_decoder_forward.1} parent=5 // pred_check
      _
    $region62: #{final_decoder_forward.1} parent=5 // pred_check_branch
      %379 = sbr.rel (%p376) target = $region64
    $region63: #{final_decoder_forward.1} parent=5 // pred_region
      %s380 = ssub.s32 %s17, 1
      %s381 = smul.u32 2, %s27
      %p382 = scmp.lt.s32.totalorder %s26, 1
      %s383 = scalar_select %p382, %s26, 1
      %p384 = scmp.lt.s32.totalorder %s381, 1
      %s385 = scalar_select %p384, %s381, 1
      %s386 = smul.addr %s383, 16
      %s387 = sadd.s32 %s385, %s386
      %s388 = smul.addr %s387, 4
      %s389 = scalar_lea.vmem %s0, %s388
      %p390 = pneg %p57
      %p391 = pneg %p54
      %s392 = smul.u32 2, %s27
      %p393 = scmp.lt.s32.totalorder %s26, 1
      %s394 = scalar_select %p393, %s26, 1
      %p395 = scmp.lt.s32.totalorder %s392, 1
      %s396 = scalar_select %p395, %s392, 1
      %s397 = smul.addr %s394, 64
      %s398 = sadd.s32 %s396, %s397
      %s399 = smul.addr %s398, 8
      %s400 = scalar_lea.vmem %s1, %s399
      %p401 = pneg %p85
      %p402 = pneg %p82
      %p403 = pneg %p106
      %p404 = pneg %p103
      %p405 = pneg %p127
      %p406 = pneg %p124
      %p407 = pneg %p148
      %p408 = pneg %p145
      %p409 = pneg %p169
      %p410 = pneg %p166
      %p411 = pneg %p190
      %p412 = pneg %p187
      %p413 = pneg %p211
      %p414 = pneg %p208
      %p415 = pneg %p232
      %p416 = pneg %p229
      %p417 = pneg %p253
      %p418 = pneg %p250
      %p419 = pneg %p274
      %p420 = pneg %p271
      %p421 = pneg %p302
      %p422 = pneg %p299
      %s423 = smul.u32 2, %s27
      %p424 = scmp.lt.s32.totalorder %s26, 1
      %s425 = scalar_select %p424, %s26, 1
      %p426 = scmp.lt.s32.totalorder %s423, 1
      %s427 = scalar_select %p426, %s423, 1
      %s428 = smul.addr %s425, 2
      %s429 = sadd.s32 %s427, %s428
      %s430 = smul.addr %s429, 8
      %s431 = scalar_lea.vmem %s11, %s430
      %s432 = smul.u32 2, %s27
      %p433 = scmp.lt.s32.totalorder %s26, 1
      %s434 = scalar_select %p433, %s26, 1
      %p435 = scmp.lt.s32.totalorder %s432, 1
      %s436 = scalar_select %p435, %s432, 1
      %s437 = smul.addr %s434, 16
      %s438 = sadd.s32 %s436, %s437
      %s439 = smul.addr %s438, 4
      %s440 = scalar_lea.vmem %s0, %s439
      %s441 = smul.u32 2, %s27
      %s442 = smul.u32 2, %s27
      %p443 = scmp.lt.s32.totalorder %s26, 1
      %s444 = scalar_select %p443, %s26, 1
      %p445 = scmp.lt.s32.totalorder %s442, 1
      %s446 = scalar_select %p445, %s442, 1
      %s447 = smul.addr %s444, 64
      %s448 = sadd.s32 %s446, %s447
      %s449 = smul.addr %s448, 8
      %s450 = scalar_lea.vmem %s1, %s449
      %s451 = smul.u32 2, %s27
      %s452 = smul.u32 2, %s27
      %p453 = scmp.lt.s32.totalorder %s26, 1
      %s454 = scalar_select %p453, %s26, 1
      %p455 = scmp.lt.s32.totalorder %s452, 1
      %s456 = scalar_select %p455, %s452, 1
      %s457 = smul.addr %s454, 2
      %s458 = sadd.s32 %s456, %s457
      %s459 = smul.addr %s458, 8
      %s460 = scalar_lea.vmem %s11, %s459
      %s461 = smul.u32 2, %s27
      %v463 = vld [vmem:[%s450] sm:$0xff]
      %v464 = vld [vmem:[%s450 + $0x8] sm:$0xff]
      %v465 = vld [vmem:[%s450 + $0x10] sm:$0xff]
      %v466 = vld [vmem:[%s450 + $0x18] sm:$0xff]
      %v467 = vld [vmem:[%s450 + $0x20] sm:$0xff]
      %v468 = vld [vmem:[%s450 + $0x28] sm:$0xff]
      %v469 = vld [vmem:[%s450 + $0x30] sm:$0xff]
      %v470 = vld [vmem:[%s450 + $0x38] sm:$0xff]
      %v471 = vld [vmem:[%s450 + $0x40] sm:$0xff]
      %v472 = vld [vmem:[%s450 + $0x48] sm:$0xff]
      %v473 = vld [vmem:[%s450 + $0x50] sm:$0xff]
      %v474 = vld [vmem:[%s450 + $0x58] sm:$0xff]
      %v475 = vld [vmem:[%s450 + $0x60] sm:$0xff]
      %v476 = vld [vmem:[%s450 + $0x68] sm:$0xff]
      %v477 = vld [vmem:[%s450 + $0x70] sm:$0xff]
      %v478 = vld [vmem:[%s450 + $0x78] sm:$0xff]
      %v479 = vld [vmem:[%s450 + $0x80] sm:$0xff]
      %v480 = vld [vmem:[%s450 + $0x88] sm:$0xff]
      %v481 = vld [vmem:[%s450 + $0x90] sm:$0xff]
      %v482 = vld [vmem:[%s450 + $0x98] sm:$0xff]
      %v483 = vld [vmem:[%s450 + $0xa0] sm:$0xff]
      %v484 = vld [vmem:[%s450 + $0xa8] sm:$0xff]
      %v485 = vld [vmem:[%s450 + $0xb0] sm:$0xff]
      %v486 = vld [vmem:[%s450 + $0xb8] sm:$0xff]
      %v487 = vld [vmem:[%s450 + $0xc0] sm:$0xff]
      %v488 = vld [vmem:[%s450 + $0xc8] sm:$0xff]
      %v489 = vld [vmem:[%s450 + $0xd0] sm:$0xff]
      %v490 = vld [vmem:[%s450 + $0xd8] sm:$0xff]
      %v491 = vld [vmem:[%s450 + $0xe0] sm:$0xff]
      %v492 = vld [vmem:[%s450 + $0xe8] sm:$0xff]
      %v493 = vld [vmem:[%s450 + $0xf0] sm:$0xff]
      %v494 = vld [vmem:[%s450 + $0xf8] sm:$0xff]
      %v495 = vld [vmem:[%s450 + $0x100] sm:$0xff]
      %v496 = vld [vmem:[%s450 + $0x108] sm:$0xff]
      %v497 = vld [vmem:[%s450 + $0x110] sm:$0xff]
      %v498 = vld [vmem:[%s450 + $0x118] sm:$0xff]
      %v499 = vld [vmem:[%s450 + $0x120] sm:$0xff]
      %v500 = vld [vmem:[%s450 + $0x128] sm:$0xff]
      %v501 = vld [vmem:[%s450 + $0x130] sm:$0xff]
      %v502 = vld [vmem:[%s450 + $0x138] sm:$0xff]
      %v503 = vld [vmem:[%s450 + $0x140] sm:$0xff]
      %v504 = vld [vmem:[%s450 + $0x148] sm:$0xff]
      %v505 = vld [vmem:[%s450 + $0x150] sm:$0xff]
      %v506 = vld [vmem:[%s450 + $0x158] sm:$0xff]
      %v507 = vld [vmem:[%s450 + $0x160] sm:$0xff]
      %v508 = vld [vmem:[%s450 + $0x168] sm:$0xff]
      %v509 = vld [vmem:[%s450 + $0x170] sm:$0xff]
      %v510 = vld [vmem:[%s450 + $0x178] sm:$0xff]
      %v511 = vld [vmem:[%s450 + $0x180] sm:$0xff]
      %v512 = vld [vmem:[%s450 + $0x188] sm:$0xff]
      %v513 = vld [vmem:[%s450 + $0x190] sm:$0xff]
      %v514 = vld [vmem:[%s450 + $0x198] sm:$0xff]
      %v515 = vld [vmem:[%s450 + $0x1a0] sm:$0xff]
      %v516 = vld [vmem:[%s450 + $0x1a8] sm:$0xff]
      %v517 = vld [vmem:[%s450 + $0x1b0] sm:$0xff]
      %v518 = vld [vmem:[%s450 + $0x1b8] sm:$0xff]
      %v519 = vld [vmem:[%s450 + $0x1c0] sm:$0xff]
      %v520 = vld [vmem:[%s450 + $0x1c8] sm:$0xff]
      %v521 = vld [vmem:[%s450 + $0x1d0] sm:$0xff]
      %v522 = vld [vmem:[%s450 + $0x1d8] sm:$0xff]
      %v523 = vld [vmem:[%s450 + $0x1e0] sm:$0xff]
      %v524 = vld [vmem:[%s450 + $0x1e8] sm:$0xff]
      %v525 = vld [vmem:[%s450 + $0x1f0] sm:$0xff]
      %v526 = vld [vmem:[%s450 + $0x1f8] sm:$0xff]
      %v527 = vpack.c.bf16 %v465, %v463
      %v528 = vpack.c.bf16 %v466, %v464
      %v529 = vpack.c.bf16 %v469, %v467
      %v530 = vpack.c.bf16 %v470, %v468
      %v531 = vpack.c.bf16 %v473, %v471
      %v532 = vpack.c.bf16 %v474, %v472
      %v533 = vpack.c.bf16 %v477, %v475
      %v534 = vpack.c.bf16 %v478, %v476
      %v535 = vpack.c.bf16 %v481, %v479
      %v536 = vpack.c.bf16 %v482, %v480
      %v537 = vpack.c.bf16 %v485, %v483
      %v538 = vpack.c.bf16 %v486, %v484
      %v539 = vpack.c.bf16 %v489, %v487
      %v540 = vpack.c.bf16 %v490, %v488
      %v541 = vpack.c.bf16 %v493, %v491
      %v542 = vpack.c.bf16 %v494, %v492
      %v543 = vpack.c.bf16 %v497, %v495
      %v544 = vpack.c.bf16 %v498, %v496
      %v545 = vpack.c.bf16 %v501, %v499
      %v546 = vpack.c.bf16 %v502, %v500
      %v547 = vpack.c.bf16 %v505, %v503
      %v548 = vpack.c.bf16 %v506, %v504
      %v549 = vpack.c.bf16 %v509, %v507
      %v550 = vpack.c.bf16 %v510, %v508
      %v551 = vpack.c.bf16 %v513, %v511
      %v552 = vpack.c.bf16 %v514, %v512
      %v553 = vpack.c.bf16 %v517, %v515
      %v554 = vpack.c.bf16 %v518, %v516
      %v555 = vpack.c.bf16 %v521, %v519
      %v556 = vpack.c.bf16 %v522, %v520
      %v557 = vpack.c.bf16 %v525, %v523
      %v558 = vpack.c.bf16 %v526, %v524
      %v559 = vld [vmem:[%s440] sm:$0xff]
      %v560 = vld [vmem:[%s440 + $0x8] sm:$0xff]
      %v561 = vld [vmem:[%s440 + $0x10] sm:$0xff]
      %v562 = vld [vmem:[%s440 + $0x18] sm:$0xff]
      %v563 = vld [vmem:[%s440 + $0x20] sm:$0xff]
      %v564 = vld [vmem:[%s440 + $0x28] sm:$0xff]
      %v565 = vld [vmem:[%s440 + $0x30] sm:$0xff]
      %v566 = vld [vmem:[%s440 + $0x38] sm:$0x33]
      %v567 = vld [vmem:[%s2] sm:$0xff]
      %v568 = vld [vmem:[%s2 + $0x8] sm:$0xff]
      %v569 = vld [vmem:[%s2 + $0x10] sm:$0xff]
      %v570 = vld [vmem:[%s2 + $0x18] sm:$0xff]
      %v571 = vld [vmem:[%s2 + $0x20] sm:$0xff]
      %v572 = vld [vmem:[%s2 + $0x28] sm:$0xff]
      %v573 = vld [vmem:[%s3] sm:$0xff]
      %v574 = vld [vmem:[%s3 + $0x8] sm:$0xff]
      %v575 = vld [vmem:[%s3 + $0x10] sm:$0xff]
      %v576 = vld [vmem:[%s3 + $0x18] sm:$0xff]
      %v577 = vld [vmem:[%s3 + $0x20] sm:$0xff]
      %v578 = vld [vmem:[%s3 + $0x28] sm:$0xff]
      %580 = vset.pattern.permute.xlu0 0
      %581 = vperm.xlu0 %580, %v573
      %v582 = vpop.permute.xlu0 %581
      %585 = vset.pattern.permute.xlu0 0
      %586 = vperm.xlu0 %585, %v574
      %v587 = vpop.permute.xlu0 %586
      %590 = vset.pattern.permute.xlu0 0
      %591 = vperm.xlu0 %590, %v575
      %v592 = vpop.permute.xlu0 %591
      %595 = vset.pattern.permute.xlu0 0
      %596 = vperm.xlu0 %595, %v576
      %v597 = vpop.permute.xlu0 %596
      %600 = vset.pattern.permute.xlu0 0
      %601 = vperm.xlu0 %600, %v577
      %v602 = vpop.permute.xlu0 %601
      %605 = vset.pattern.permute.xlu0 0
      %606 = vperm.xlu0 %605, %v578
      %v607 = vpop.permute.xlu0 %606
      %v615 = vunpack.c.l.b16 %v567
      %v616 = vunpack.c.h.b16 %v567
      %v617 = vunpack.c.l.b16 %v568
      %v618 = vunpack.c.h.b16 %v568
      %v619 = vunpack.c.l.b16 %v569
      %v620 = vunpack.c.h.b16 %v569
      %v621 = vunpack.c.l.b16 %v570
      %v622 = vunpack.c.h.b16 %v570
      %v623 = vunpack.c.l.b16 %v571
      %v624 = vunpack.c.h.b16 %v571
      %v625 = vunpack.c.l.b16 %v572
      %v626 = vunpack.c.h.b16 %v572
      %v627 = vpack.c.b16 %v617, %v615
      %v628 = vpack.c.b16 %v618, %v616
      %v629 = vpack.c.b16 %v621, %v619
      %v630 = vpack.c.b16 %v622, %v620
      %v631 = vpack.c.b16 %v625, %v623
      %v632 = vpack.c.b16 %v626, %v624
      %639 = vmatprep.subr.bf16.mxu0 %v528
      %640 = vmatpush1.bf16.msra.mxu0 %v527
      %641 = vmatprep.subr.bf16.mxu0 %v530
      %642 = vmatpush1.bf16.msra.mxu0 %v529
      %643 = vmatprep.subr.bf16.mxu0 %v532
      %644 = vmatpush1.bf16.msra.mxu0 %v531
      %645 = vmatprep.subr.bf16.mxu0 %v534
      %646 = vmatpush1.bf16.msra.mxu0 %v533
      %647 = vmatprep.subr.bf16.mxu0 %v536
      %648 = vmatpush1.bf16.msra.mxu0 %v535
      %649 = vmatprep.subr.bf16.mxu0 %v538
      %650 = vmatpush1.bf16.msra.mxu0 %v537
      %651 = vmatprep.subr.bf16.mxu0 %v540
      %652 = vmatpush1.bf16.msra.mxu0 %v539
      %653 = vmatprep.subr.bf16.mxu0 %v542
      %654 = vmatpush1.bf16.msra.mxu0 %v541
      %655 = vmatprep.subr.bf16.mxu0 %v544
      %656 = vmatpush1.bf16.msra.mxu0 %v543
      %657 = vmatprep.subr.bf16.mxu0 %v546
      %658 = vmatpush1.bf16.msra.mxu0 %v545
      %659 = vmatprep.subr.bf16.mxu0 %v548
      %660 = vmatpush1.bf16.msra.mxu0 %v547
      %661 = vmatprep.subr.bf16.mxu0 %v550
      %662 = vmatpush1.bf16.msra.mxu0 %v549
      %663 = vmatprep.subr.bf16.mxu0 %v552
      %664 = vmatpush1.bf16.msra.mxu0 %v551
      %665 = vmatprep.subr.bf16.mxu0 %v554
      %666 = vmatpush1.bf16.msra.mxu0 %v553
      %667 = vmatprep.subr.bf16.mxu0 %v556
      %668 = vmatpush1.bf16.msra.mxu0 %v555
      %669 = vmatprep.subr.bf16.mxu0 %v558
      %670 = vmatpush1.bf16.msra.mxu0 %v557
      %671 = vmatprep.mubr.bf16.mxu0 %v628
      %672 = vmatmul.mubr.bf16.gmra.mrb[0].mxu0 %v627
      %v673 = vpop.f32.mrb[0].mxu0
      %v674 = vadd.f32 %v582, %v673
      %v675 = vpop.f32.mrb[0].mxu0
      %v676 = vadd.f32 %v582, %v675
      %v677 = vpop.f32.mrb[0].mxu0
      %v678 = vadd.f32 %v587, %v677
      %v679 = vpop.f32.mrb[0].mxu0
      %v680 = vadd.f32 %v587, %v679
      %681 = vmatprep.mubr.bf16.mxu0 %v630
      %682 = vmatmul.mubr.bf16.gmra.mrb[0].mxu0 %v629
      %v683 = vpop.f32.mrb[0].mxu0
      %v684 = vadd.f32 %v592, %v683
      %v685 = vpop.f32.mrb[0].mxu0
      %v686 = vadd.f32 %v592, %v685
      %v687 = vpop.f32.mrb[0].mxu0
      %v688 = vadd.f32 %v597, %v687
      %v689 = vpop.f32.mrb[0].mxu0
      %v690 = vadd.f32 %v597, %v689
      %691 = vmatprep.mubr.bf16.mxu0 %v632
      %692 = vmatmul.mubr.bf16.gmra.mrb[0].mxu0 %v631
      %v693 = vpop.f32.mrb[0].mxu0
      %v694 = vadd.f32 %v602, %v693
      %v695 = vpop.f32.mrb[0].mxu0
      %v696 = vadd.f32 %v602, %v695
      %v697 = vpop.f32.mrb[0].mxu0
      %v698 = vadd.f32 %v607, %v697
      %v699 = vpop.f32.mrb[0].mxu0
      %v700 = vadd.f32 %v607, %v699
      %701 = vdwg.mxu0
      %v702 = vmax.f32 %v674, 0.0
      %v703 = vmax.f32 %v676, 0.0
      %v704 = vmax.f32 %v678, 0.0
      %v705 = vmax.f32 %v680, 0.0
      %v706 = vmax.f32 %v684, 0.0
      %v707 = vmax.f32 %v686, 0.0
      %v708 = vmax.f32 %v688, 0.0
      %v709 = vmax.f32 %v690, 0.0
      %v710 = vmax.f32 %v694, 0.0
      %v711 = vmax.f32 %v696, 0.0
      %v712 = vmax.f32 %v698, 0.0
      %v713 = vmax.f32 %v700, 0.0
      %v714 = vld [vmem:[%s4] sm:$0xf]
      %v715 = vld [vmem:[%s4 + $0x4] sm:$0xf]
      %v716 = vld [vmem:[%s4 + $0x8] sm:$0xf]
      %v717 = vld [vmem:[%s4 + $0xc] sm:$0xf]
      %v718 = vld [vmem:[%s4 + $0x10] sm:$0xf]
      %v719 = vld [vmem:[%s4 + $0x14] sm:$0xf]
      %v720 = vld [vmem:[%s4 + $0x18] sm:$0xf]
      %v721 = vld [vmem:[%s4 + $0x1c] sm:$0xf]
      %v722 = vld [vmem:[%s4 + $0x20] sm:$0xf]
      %v723 = vld [vmem:[%s4 + $0x24] sm:$0xf]
      %v724 = vld [vmem:[%s4 + $0x28] sm:$0xf]
      %v725 = vld [vmem:[%s4 + $0x2c] sm:$0xf]
      %v726 = vld [vmem:[%s4 + $0x30] sm:$0xf]
      %v727 = vld [vmem:[%s4 + $0x34] sm:$0xf]
      %v728 = vld [vmem:[%s4 + $0x38] sm:$0xf]
      %v729 = vld [vmem:[%s4 + $0x3c] sm:$0xf]
      %v730 = vld [vmem:[%s4 + $0x40] sm:$0xf]
      %v731 = vld [vmem:[%s4 + $0x44] sm:$0xf]
      %v732 = vld [vmem:[%s4 + $0x48] sm:$0xf]
      %v733 = vld [vmem:[%s4 + $0x4c] sm:$0xf]
      %v734 = vld [vmem:[%s4 + $0x50] sm:$0xf]
      %v735 = vld [vmem:[%s4 + $0x54] sm:$0xf]
      %v736 = vld [vmem:[%s4 + $0x58] sm:$0xf]
      %v737 = vld [vmem:[%s4 + $0x5c] sm:$0xf]
      %v738 = vld [vmem:[%s4 + $0x60] sm:$0xf]
      %v739 = vld [vmem:[%s4 + $0x64] sm:$0xf]
      %v740 = vld [vmem:[%s4 + $0x68] sm:$0xf]
      %v741 = vld [vmem:[%s4 + $0x6c] sm:$0xf]
      %v742 = vld [vmem:[%s4 + $0x70] sm:$0xf]
      %v743 = vld [vmem:[%s4 + $0x74] sm:$0xf]
      %v744 = vld [vmem:[%s4 + $0x78] sm:$0xf]
      %v745 = vld [vmem:[%s4 + $0x7c] sm:$0xf]
      %v746 = vld [vmem:[%s5] sm:$0xf]
      %v747 = vld [vmem:[%s5 + $0x4] sm:$0xf]
      %v748 = vld [vmem:[%s5 + $0x8] sm:$0xf]
      %v749 = vld [vmem:[%s5 + $0xc] sm:$0xf]
      %v750 = vld [vmem:[%s5 + $0x10] sm:$0xf]
      %v751 = vld [vmem:[%s5 + $0x14] sm:$0xf]
      %v752 = vld [vmem:[%s5 + $0x18] sm:$0xf]
      %v753 = vld [vmem:[%s5 + $0x1c] sm:$0xf]
      %v754 = vld [vmem:[%s5 + $0x20] sm:$0xf]
      %v755 = vld [vmem:[%s5 + $0x24] sm:$0xf]
      %v756 = vld [vmem:[%s5 + $0x28] sm:$0xf]
      %v757 = vld [vmem:[%s5 + $0x2c] sm:$0xf]
      %v758 = vld [vmem:[%s5 + $0x30] sm:$0xf]
      %v759 = vld [vmem:[%s5 + $0x34] sm:$0xf]
      %v760 = vld [vmem:[%s5 + $0x38] sm:$0xf]
      %v761 = vld [vmem:[%s5 + $0x3c] sm:$0xf]
      %v762 = vld [vmem:[%s5 + $0x40] sm:$0xf]
      %v763 = vld [vmem:[%s5 + $0x44] sm:$0xf]
      %v764 = vld [vmem:[%s5 + $0x48] sm:$0xf]
      %v765 = vld [vmem:[%s5 + $0x4c] sm:$0xf]
      %v766 = vld [vmem:[%s5 + $0x50] sm:$0xf]
      %v767 = vld [vmem:[%s5 + $0x54] sm:$0xf]
      %v768 = vld [vmem:[%s5 + $0x58] sm:$0xf]
      %v769 = vld [vmem:[%s5 + $0x5c] sm:$0xf]
      %v770 = vld [vmem:[%s5 + $0x60] sm:$0xf]
      %v771 = vld [vmem:[%s5 + $0x64] sm:$0xf]
      %v772 = vld [vmem:[%s5 + $0x68] sm:$0xf]
      %v773 = vld [vmem:[%s5 + $0x6c] sm:$0xf]
      %v774 = vld [vmem:[%s5 + $0x70] sm:$0xf]
      %v775 = vld [vmem:[%s5 + $0x74] sm:$0xf]
      %v776 = vld [vmem:[%s5 + $0x78] sm:$0xf]
      %v777 = vld [vmem:[%s5 + $0x7c] sm:$0xf]
      %v778 = vpack.c.bf16 %v704, %v702
      %v779 = vpack.c.bf16 %v705, %v703
      %v780 = vpack.c.bf16 %v708, %v706
      %v781 = vpack.c.bf16 %v709, %v707
      %v782 = vpack.c.bf16 %v712, %v710
      %v783 = vpack.c.bf16 %v713, %v711
      %v816 = vunpack.c.l.b16 %v746
      %v817 = vunpack.c.l.b16 %v747
      %v818 = vunpack.c.l.b16 %v748
      %v819 = vunpack.c.l.b16 %v749
      %v820 = vunpack.c.l.b16 %v750
      %v821 = vunpack.c.l.b16 %v751
      %v822 = vunpack.c.l.b16 %v752
      %v823 = vunpack.c.l.b16 %v753
      %v824 = vunpack.c.l.b16 %v754
      %v825 = vunpack.c.l.b16 %v755
      %v826 = vunpack.c.l.b16 %v756
      %v827 = vunpack.c.l.b16 %v757
      %v828 = vunpack.c.l.b16 %v758
      %v829 = vunpack.c.l.b16 %v759
      %v830 = vunpack.c.l.b16 %v760
      %v831 = vunpack.c.l.b16 %v761
      %v832 = vunpack.c.l.b16 %v762
      %v833 = vunpack.c.l.b16 %v763
      %v834 = vunpack.c.l.b16 %v764
      %v835 = vunpack.c.l.b16 %v765
      %v836 = vunpack.c.l.b16 %v766
      %v837 = vunpack.c.l.b16 %v767
      %v838 = vunpack.c.l.b16 %v768
      %v839 = vunpack.c.l.b16 %v769
      %v840 = vunpack.c.l.b16 %v770
      %v841 = vunpack.c.l.b16 %v771
      %v842 = vunpack.c.l.b16 %v772
      %v843 = vunpack.c.l.b16 %v773
      %v844 = vunpack.c.l.b16 %v774
      %v845 = vunpack.c.l.b16 %v775
      %v846 = vunpack.c.l.b16 %v776
      %v847 = vunpack.c.l.b16 %v777
      %v848 = vpack.c.b16 %v817, %v816
      %v849 = vpack.c.b16 %v819, %v818
      %v850 = vpack.c.b16 %v821, %v820
      %v851 = vpack.c.b16 %v823, %v822
      %v852 = vpack.c.b16 %v825, %v824
      %v853 = vpack.c.b16 %v827, %v826
      %v854 = vpack.c.b16 %v829, %v828
      %v855 = vpack.c.b16 %v831, %v830
      %v856 = vpack.c.b16 %v833, %v832
      %v857 = vpack.c.b16 %v835, %v834
      %v858 = vpack.c.b16 %v837, %v836
      %v859 = vpack.c.b16 %v839, %v838
      %v860 = vpack.c.b16 %v841, %v840
      %v861 = vpack.c.b16 %v843, %v842
      %v862 = vpack.c.b16 %v845, %v844
      %v863 = vpack.c.b16 %v847, %v846
      %vm864 = vcmask 392192
      %v866 = vsel %vm864, %v848, 0
      %v869 = vsel %vm864, %v849, 0
      %v872 = vsel %vm864, %v850, 0
      %v875 = vsel %vm864, %v851, 0
      %v878 = vsel %vm864, %v852, 0
      %v881 = vsel %vm864, %v853, 0
      %v884 = vsel %vm864, %v854, 0
      %v887 = vsel %vm864, %v855, 0
      %v890 = vsel %vm864, %v856, 0
      %v893 = vsel %vm864, %v857, 0
      %v896 = vsel %vm864, %v858, 0
      %v899 = vsel %vm864, %v859, 0
      %v902 = vsel %vm864, %v860, 0
      %v905 = vsel %vm864, %v861, 0
      %v908 = vsel %vm864, %v862, 0
      %v911 = vsel %vm864, %v863, 0
      %913 = vmatprep.subr.bf16.mxu0 %v779
      %914 = vmatpush1.bf16.msra.mxu0 %v778
      %915 = vmatprep.subr.bf16.mxu0 %v781
      %916 = vmatpush1.bf16.msra.mxu0 %v780
      %917 = vmatprep.subr.bf16.mxu0 %v783
      %918 = vmatpush1.bf16.msra.mxu0 %v782
      %919 = vmatprep.subr.bf16.mxu0 0
      %920 = vmatpush1.bf16.msra.mxu0 0
      %921 = vmatprep.subr.bf16.mxu0 0
      %922 = vmatpush1.bf16.msra.mxu0 0
      %923 = vmatprep.subr.bf16.mxu0 0
      %924 = vmatpush1.bf16.msra.mxu0 0
      %925 = vmatprep.subr.bf16.mxu0 0
      %926 = vmatpush1.bf16.msra.mxu0 0
      %927 = vmatprep.subr.bf16.mxu0 0
      %928 = vmatpush1.bf16.msra.mxu0 0
      %929 = vmatprep.subr.bf16.mxu0 0
      %930 = vmatpush1.bf16.msra.mxu0 0
      %931 = vmatprep.subr.bf16.mxu0 0
      %932 = vmatpush1.bf16.msra.mxu0 0
      %933 = vmatprep.subr.bf16.mxu0 0
      %934 = vmatpush1.bf16.msra.mxu0 0
      %935 = vmatprep.subr.bf16.mxu0 0
      %936 = vmatpush1.bf16.msra.mxu0 0
      %937 = vmatprep.subr.bf16.mxu0 0
      %938 = vmatpush1.bf16.msra.mxu0 0
      %939 = vmatprep.subr.bf16.mxu0 0
      %940 = vmatpush1.bf16.msra.mxu0 0
      %941 = vmatprep.subr.bf16.mxu0 0
      %942 = vmatpush1.bf16.msra.mxu0 0
      %943 = vmatprep.subr.bf16.mxu0 0
      %944 = vmatpush1.bf16.msra.mxu0 0
      %945 = vmatprep.mubr.bf16.mxu0 0
      %946 = vmatmul.mubr.bf16.gmra.mrb[0].mxu0 %v866
      %v947 = vpop.f32.mrb[0].mxu0
      %v948 = vadd.f32 0.0, %v947
      %v949 = vpop.f32.mrb[0].mxu0
      %v950 = vadd.f32 0.0, %v949
      %v951 = vpop.f32.mrb[0].mxu0
      %v952 = vadd.f32 0.0, %v951
      %v953 = vpop.f32.mrb[0].mxu0
      %v954 = vadd.f32 0.0, %v953
      %955 = vmatprep.mubr.bf16.mxu0 0
      %956 = vmatmul.mubr.bf16.gmra.mrb[0].mxu0 %v869
      %v957 = vpop.f32.mrb[0].mxu0
      %v958 = vadd.f32 0.0, %v957
      %v959 = vpop.f32.mrb[0].mxu0
      %v960 = vadd.f32 0.0, %v959
      %v961 = vpop.f32.mrb[0].mxu0
      %v962 = vadd.f32 0.0, %v961
      %v963 = vpop.f32.mrb[0].mxu0
      %v964 = vadd.f32 0.0, %v963
      %965 = vmatprep.mubr.bf16.mxu0 0
      %966 = vmatmul.mubr.bf16.gmra.mrb[0].mxu0 %v872
      %v967 = vpop.f32.mrb[0].mxu0
      %v968 = vadd.f32 0.0, %v967
      %v969 = vpop.f32.mrb[0].mxu0
      %v970 = vadd.f32 0.0, %v969
      %v971 = vpop.f32.mrb[0].mxu0
      %v972 = vadd.f32 0.0, %v971
      %v973 = vpop.f32.mrb[0].mxu0
      %v974 = vadd.f32 0.0, %v973
      %975 = vmatprep.mubr.bf16.mxu0 0
      %976 = vmatmul.mubr.bf16.gmra.mrb[0].mxu0 %v875
      %v977 = vpop.f32.mrb[0].mxu0
      %v978 = vadd.f32 0.0, %v977
      %v979 = vpop.f32.mrb[0].mxu0
      %v980 = vadd.f32 0.0, %v979
      %v981 = vpop.f32.mrb[0].mxu0
      %v982 = vadd.f32 0.0, %v981
      %v983 = vpop.f32.mrb[0].mxu0
      %v984 = vadd.f32 0.0, %v983
      %985 = vmatprep.mubr.bf16.mxu0 0
      %986 = vmatmul.mubr.bf16.gmra.mrb[0].mxu0 %v878
      %v987 = vpop.f32.mrb[0].mxu0
      %v988 = vadd.f32 0.0, %v987
      %v989 = vpop.f32.mrb[0].mxu0
      %v990 = vadd.f32 0.0, %v989
      %v991 = vpop.f32.mrb[0].mxu0
      %v992 = vadd.f32 0.0, %v991
      %v993 = vpop.f32.mrb[0].mxu0
      %v994 = vadd.f32 0.0, %v993
      %995 = vmatprep.mubr.bf16.mxu0 0
      %996 = vmatmul.mubr.bf16.gmra.mrb[0].mxu0 %v881
      %v997 = vpop.f32.mrb[0].mxu0
      %v998 = vadd.f32 0.0, %v997
      %v999 = vpop.f32.mrb[0].mxu0
      %v1000 = vadd.f32 0.0, %v999
      %v1001 = vpop.f32.mrb[0].mxu0
      %v1002 = vadd.f32 0.0, %v1001
      %v1003 = vpop.f32.mrb[0].mxu0
      %v1004 = vadd.f32 0.0, %v1003
      %1005 = vmatprep.mubr.bf16.mxu0 0
      %1006 = vmatmul.mubr.bf16.gmra.mrb[0].mxu0 %v884
      %v1007 = vpop.f32.mrb[0].mxu0
      %v1008 = vadd.f32 0.0, %v1007
      %v1009 = vpop.f32.mrb[0].mxu0
      %v1010 = vadd.f32 0.0, %v1009
      %v1011 = vpop.f32.mrb[0].mxu0
      %v1012 = vadd.f32 0.0, %v1011
      %v1013 = vpop.f32.mrb[0].mxu0
      %v1014 = vadd.f32 0.0, %v1013
      %1015 = vmatprep.mubr.bf16.mxu0 0
      %1016 = vmatmul.mubr.bf16.gmra.mrb[0].mxu0 %v887
      %v1017 = vpop.f32.mrb[0].mxu0
      %v1018 = vadd.f32 0.0, %v1017
      %v1019 = vpop.f32.mrb[0].mxu0
      %v1020 = vadd.f32 0.0, %v1019
      %v1021 = vpop.f32.mrb[0].mxu0
      %v1022 = vadd.f32 0.0, %v1021
      %v1023 = vpop.f32.mrb[0].mxu0
      %v1024 = vadd.f32 0.0, %v1023
      %1025 = vmatprep.mubr.bf16.mxu0 0
      %1026 = vmatmul.mubr.bf16.gmra.mrb[0].mxu0 %v890
      %v1027 = vpop.f32.mrb[0].mxu0
      %v1028 = vadd.f32 0.0, %v1027
      %v1029 = vpop.f32.mrb[0].mxu0
      %v1030 = vadd.f32 0.0, %v1029
      %v1031 = vpop.f32.mrb[0].mxu0
      %v1032 = vadd.f32 0.0, %v1031
      %v1033 = vpop.f32.mrb[0].mxu0
      %v1034 = vadd.f32 0.0, %v1033
      %1035 = vmatprep.mubr.bf16.mxu0 0
      %1036 = vmatmul.mubr.bf16.gmra.mrb[0].mxu0 %v893
      %v1037 = vpop.f32.mrb[0].mxu0
      %v1038 = vadd.f32 0.0, %v1037
      %v1039 = vpop.f32.mrb[0].mxu0
      %v1040 = vadd.f32 0.0, %v1039
      %v1041 = vpop.f32.mrb[0].mxu0
      %v1042 = vadd.f32 0.0, %v1041
      %v1043 = vpop.f32.mrb[0].mxu0
      %v1044 = vadd.f32 0.0, %v1043
      %1045 = vmatprep.mubr.bf16.mxu0 0
      %1046 = vmatmul.mubr.bf16.gmra.mrb[0].mxu0 %v896
      %v1047 = vpop.f32.mrb[0].mxu0
      %v1048 = vadd.f32 0.0, %v1047
      %v1049 = vpop.f32.mrb[0].mxu0
      %v1050 = vadd.f32 0.0, %v1049
      %v1051 = vpop.f32.mrb[0].mxu0
      %v1052 = vadd.f32 0.0, %v1051
      %v1053 = vpop.f32.mrb[0].mxu0
      %v1054 = vadd.f32 0.0, %v1053
      %1055 = vmatprep.mubr.bf16.mxu0 0
      %1056 = vmatmul.mubr.bf16.gmra.mrb[0].mxu0 %v899
      %v1057 = vpop.f32.mrb[0].mxu0
      %v1058 = vadd.f32 0.0, %v1057
      %v1059 = vpop.f32.mrb[0].mxu0
      %v1060 = vadd.f32 0.0, %v1059
      %v1061 = vpop.f32.mrb[0].mxu0
      %v1062 = vadd.f32 0.0, %v1061
      %v1063 = vpop.f32.mrb[0].mxu0
      %v1064 = vadd.f32 0.0, %v1063
      %1065 = vmatprep.mubr.bf16.mxu0 0
      %1066 = vmatmul.mubr.bf16.gmra.mrb[0].mxu0 %v902
      %v1067 = vpop.f32.mrb[0].mxu0
      %v1068 = vadd.f32 0.0, %v1067
      %v1069 = vpop.f32.mrb[0].mxu0
      %v1070 = vadd.f32 0.0, %v1069
      %v1071 = vpop.f32.mrb[0].mxu0
      %v1072 = vadd.f32 0.0, %v1071
      %v1073 = vpop.f32.mrb[0].mxu0
      %v1074 = vadd.f32 0.0, %v1073
      %1075 = vmatprep.mubr.bf16.mxu0 0
      %1076 = vmatmul.mubr.bf16.gmra.mrb[0].mxu0 %v905
      %v1077 = vpop.f32.mrb[0].mxu0
      %v1078 = vadd.f32 0.0, %v1077
      %v1079 = vpop.f32.mrb[0].mxu0
      %v1080 = vadd.f32 0.0, %v1079
      %v1081 = vpop.f32.mrb[0].mxu0
      %v1082 = vadd.f32 0.0, %v1081
      %v1083 = vpop.f32.mrb[0].mxu0
      %v1084 = vadd.f32 0.0, %v1083
      %1085 = vmatprep.mubr.bf16.mxu0 0
      %1086 = vmatmul.mubr.bf16.gmra.mrb[0].mxu0 %v908
      %v1087 = vpop.f32.mrb[0].mxu0
      %v1088 = vadd.f32 0.0, %v1087
      %v1089 = vpop.f32.mrb[0].mxu0
      %v1090 = vadd.f32 0.0, %v1089
      %v1091 = vpop.f32.mrb[0].mxu0
      %v1092 = vadd.f32 0.0, %v1091
      %v1093 = vpop.f32.mrb[0].mxu0
      %v1094 = vadd.f32 0.0, %v1093
      %1095 = vmatprep.mubr.bf16.mxu0 0
      %1096 = vmatmul.mubr.bf16.gmra.mrb[0].mxu0 %v911
      %v1097 = vpop.f32.mrb[0].mxu0
      %v1098 = vadd.f32 0.0, %v1097
      %v1099 = vpop.f32.mrb[0].mxu0
      %v1100 = vadd.f32 0.0, %v1099
      %v1101 = vpop.f32.mrb[0].mxu0
      %v1102 = vadd.f32 0.0, %v1101
      %v1103 = vpop.f32.mrb[0].mxu0
      %v1104 = vadd.f32 0.0, %v1103
      %1105 = vdwg.mxu0
      %v1138 = vunpack.c.l.b16 %v714
      %v1139 = vunpack.c.l.b16 %v715
      %v1140 = vunpack.c.l.b16 %v716
      %v1141 = vunpack.c.l.b16 %v717
      %v1142 = vunpack.c.l.b16 %v718
      %v1143 = vunpack.c.l.b16 %v719
      %v1144 = vunpack.c.l.b16 %v720
      %v1145 = vunpack.c.l.b16 %v721
      %v1146 = vunpack.c.l.b16 %v722
      %v1147 = vunpack.c.l.b16 %v723
      %v1148 = vunpack.c.l.b16 %v724
      %v1149 = vunpack.c.l.b16 %v725
      %v1150 = vunpack.c.l.b16 %v726
      %v1151 = vunpack.c.l.b16 %v727
      %v1152 = vunpack.c.l.b16 %v728
      %v1153 = vunpack.c.l.b16 %v729
      %v1154 = vunpack.c.l.b16 %v730
      %v1155 = vunpack.c.l.b16 %v731
      %v1156 = vunpack.c.l.b16 %v732
      %v1157 = vunpack.c.l.b16 %v733
      %v1158 = vunpack.c.l.b16 %v734
      %v1159 = vunpack.c.l.b16 %v735
      %v1160 = vunpack.c.l.b16 %v736
      %v1161 = vunpack.c.l.b16 %v737
      %v1162 = vunpack.c.l.b16 %v738
      %v1163 = vunpack.c.l.b16 %v739
      %v1164 = vunpack.c.l.b16 %v740
      %v1165 = vunpack.c.l.b16 %v741
      %v1166 = vunpack.c.l.b16 %v742
      %v1167 = vunpack.c.l.b16 %v743
      %v1168 = vunpack.c.l.b16 %v744
      %v1169 = vunpack.c.l.b16 %v745
      %v1170 = vpack.c.b16 %v1139, %v1138
      %v1171 = vpack.c.b16 %v1141, %v1140
      %v1172 = vpack.c.b16 %v1143, %v1142
      %v1173 = vpack.c.b16 %v1145, %v1144
      %v1174 = vpack.c.b16 %v1147, %v1146
      %v1175 = vpack.c.b16 %v1149, %v1148
      %v1176 = vpack.c.b16 %v1151, %v1150
      %v1177 = vpack.c.b16 %v1153, %v1152
      %v1178 = vpack.c.b16 %v1155, %v1154
      %v1179 = vpack.c.b16 %v1157, %v1156
      %v1180 = vpack.c.b16 %v1159, %v1158
      %v1181 = vpack.c.b16 %v1161, %v1160
      %v1182 = vpack.c.b16 %v1163, %v1162
      %v1183 = vpack.c.b16 %v1165, %v1164
      %v1184 = vpack.c.b16 %v1167, %v1166
      %v1185 = vpack.c.b16 %v1169, %v1168
      %v1194 = vunpack.c.l.b16 %v559
      %v1195 = vunpack.c.h.b16 %v559
      %v1196 = vunpack.c.l.b16 %v560
      %v1197 = vunpack.c.h.b16 %v560
      %v1198 = vunpack.c.l.b16 %v561
      %v1199 = vunpack.c.h.b16 %v561
      %v1200 = vunpack.c.l.b16 %v562
      %v1201 = vunpack.c.h.b16 %v562
      %v1202 = vunpack.c.l.b16 %v563
      %v1203 = vunpack.c.h.b16 %v563
      %v1204 = vunpack.c.l.b16 %v564
      %v1205 = vunpack.c.h.b16 %v564
      %v1206 = vunpack.c.l.b16 %v565
      %v1207 = vunpack.c.h.b16 %v565
      %v1208 = vunpack.c.l.b16 %v566
      %v1209 = vunpack.c.h.b16 %v566
      %v1210 = vpack.c.b16 %v1196, %v1194
      %v1211 = vpack.c.b16 %v1197, %v1195
      %v1212 = vpack.c.b16 %v1200, %v1198
      %v1213 = vpack.c.b16 %v1201, %v1199
      %v1214 = vpack.c.b16 %v1204, %v1202
      %v1215 = vpack.c.b16 %v1205, %v1203
      %v1216 = vpack.c.b16 %v1208, %v1206
      %v1217 = vpack.c.b16 %v1209, %v1207
      %vm1224 = vcmask 490496
      %v1226 = vsel %vm1224, %v1170, 0
      %v1229 = vsel %vm1224, %v1171, 0
      %v1232 = vsel %vm1224, %v1172, 0
      %v1235 = vsel %vm1224, %v1173, 0
      %v1238 = vsel %vm1224, %v1174, 0
      %v1241 = vsel %vm1224, %v1175, 0
      %v1244 = vsel %vm1224, %v1176, 0
      %v1247 = vsel %vm1224, %v1177, 0
      %v1250 = vsel %vm1224, %v1178, 0
      %v1253 = vsel %vm1224, %v1179, 0
      %v1256 = vsel %vm1224, %v1180, 0
      %v1259 = vsel %vm1224, %v1181, 0
      %v1262 = vsel %vm1224, %v1182, 0
      %v1265 = vsel %vm1224, %v1183, 0
      %v1268 = vsel %vm1224, %v1184, 0
      %v1271 = vsel %vm1224, %v1185, 0
      %vm1273 = vcmask 1045504
      %v1275 = vsel %vm1273, %v1216, 0
      %v1278 = vsel %vm1273, %v1217, 0
      %1280 = vmatprep.subr.bf16.mxu0 %v1211
      %1281 = vmatpush1.bf16.msra.mxu0 %v1210
      %1282 = vmatprep.subr.bf16.mxu0 %v1213
      %1283 = vmatpush1.bf16.msra.mxu0 %v1212
      %1284 = vmatprep.subr.bf16.mxu0 %v1215
      %1285 = vmatpush1.bf16.msra.mxu0 %v1214
      %1286 = vmatprep.subr.bf16.mxu0 %v1278
      %1287 = vmatpush1.bf16.msra.mxu0 %v1275
      %1288 = vmatprep.subr.bf16.mxu0 0
      %1289 = vmatpush1.bf16.msra.mxu0 0
      %1290 = vmatprep.subr.bf16.mxu0 0
      %1291 = vmatpush1.bf16.msra.mxu0 0
      %1292 = vmatprep.subr.bf16.mxu0 0
      %1293 = vmatpush1.bf16.msra.mxu0 0
      %1294 = vmatprep.subr.bf16.mxu0 0
      %1295 = vmatpush1.bf16.msra.mxu0 0
      %1296 = vmatprep.subr.bf16.mxu0 0
      %1297 = vmatpush1.bf16.msra.mxu0 0
      %1298 = vmatprep.subr.bf16.mxu0 0
      %1299 = vmatpush1.bf16.msra.mxu0 0
      %1300 = vmatprep.subr.bf16.mxu0 0
      %1301 = vmatpush1.bf16.msra.mxu0 0
      %1302 = vmatprep.subr.bf16.mxu0 0
      %1303 = vmatpush1.bf16.msra.mxu0 0
      %1304 = vmatprep.subr.bf16.mxu0 0
      %1305 = vmatpush1.bf16.msra.mxu0 0
      %1306 = vmatprep.subr.bf16.mxu0 0
      %1307 = vmatpush1.bf16.msra.mxu0 0
      %1308 = vmatprep.subr.bf16.mxu0 0
      %1309 = vmatpush1.bf16.msra.mxu0 0
      %1310 = vmatprep.subr.bf16.mxu0 0
      %1311 = vmatpush1.bf16.msra.mxu0 0
      %1312 = vmatprep.mubr.bf16.mxu0 0
      %1313 = vmatmul.mubr.bf16.gmra.mrb[0].mxu0 %v1226
      %v1314 = vpop.f32.mrb[0].mxu0
      %v1315 = vadd.f32 %v948, %v1314
      %v1316 = vpop.f32.mrb[0].mxu0
      %v1317 = vadd.f32 %v950, %v1316
      %v1318 = vpop.f32.mrb[0].mxu0
      %v1319 = vadd.f32 %v952, %v1318
      %v1320 = vpop.f32.mrb[0].mxu0
      %v1321 = vadd.f32 %v954, %v1320
      %1322 = vmatprep.mubr.bf16.mxu0 0
      %1323 = vmatmul.mubr.bf16.gmra.mrb[0].mxu0 %v1229
      %v1324 = vpop.f32.mrb[0].mxu0
      %v1325 = vadd.f32 %v958, %v1324
      %v1326 = vpop.f32.mrb[0].mxu0
      %v1327 = vadd.f32 %v960, %v1326
      %v1328 = vpop.f32.mrb[0].mxu0
      %v1329 = vadd.f32 %v962, %v1328
      %v1330 = vpop.f32.mrb[0].mxu0
      %v1331 = vadd.f32 %v964, %v1330
      %1332 = vmatprep.mubr.bf16.mxu0 0
      %1333 = vmatmul.mubr.bf16.gmra.mrb[0].mxu0 %v1232
      %v1334 = vpop.f32.mrb[0].mxu0
      %v1335 = vadd.f32 %v968, %v1334
      %v1336 = vpop.f32.mrb[0].mxu0
      %v1337 = vadd.f32 %v970, %v1336
      %v1338 = vpop.f32.mrb[0].mxu0
      %v1339 = vadd.f32 %v972, %v1338
      %v1340 = vpop.f32.mrb[0].mxu0
      %v1341 = vadd.f32 %v974, %v1340
      %1342 = vmatprep.mubr.bf16.mxu0 0
      %1343 = vmatmul.mubr.bf16.gmra.mrb[0].mxu0 %v1235
      %v1344 = vpop.f32.mrb[0].mxu0
      %v1345 = vadd.f32 %v978, %v1344
      %v1346 = vpop.f32.mrb[0].mxu0
      %v1347 = vadd.f32 %v980, %v1346
      %v1348 = vpop.f32.mrb[0].mxu0
      %v1349 = vadd.f32 %v982, %v1348
      %v1350 = vpop.f32.mrb[0].mxu0
      %v1351 = vadd.f32 %v984, %v1350
      %1352 = vmatprep.mubr.bf16.mxu0 0
      %1353 = vmatmul.mubr.bf16.gmra.mrb[0].mxu0 %v1238
      %v1354 = vpop.f32.mrb[0].mxu0
      %v1355 = vadd.f32 %v988, %v1354
      %v1356 = vpop.f32.mrb[0].mxu0
      %v1357 = vadd.f32 %v990, %v1356
      %v1358 = vpop.f32.mrb[0].mxu0
      %v1359 = vadd.f32 %v992, %v1358
      %v1360 = vpop.f32.mrb[0].mxu0
      %v1361 = vadd.f32 %v994, %v1360
      %1362 = vmatprep.mubr.bf16.mxu0 0
      %1363 = vmatmul.mubr.bf16.gmra.mrb[0].mxu0 %v1241
      %v1364 = vpop.f32.mrb[0].mxu0
      %v1365 = vadd.f32 %v998, %v1364
      %v1366 = vpop.f32.mrb[0].mxu0
      %v1367 = vadd.f32 %v1000, %v1366
      %v1368 = vpop.f32.mrb[0].mxu0
      %v1369 = vadd.f32 %v1002, %v1368
      %v1370 = vpop.f32.mrb[0].mxu0
      %v1371 = vadd.f32 %v1004, %v1370
      %1372 = vmatprep.mubr.bf16.mxu0 0
      %1373 = vmatmul.mubr.bf16.gmra.mrb[0].mxu0 %v1244
      %v1374 = vpop.f32.mrb[0].mxu0
      %v1375 = vadd.f32 %v1008, %v1374
      %v1376 = vpop.f32.mrb[0].mxu0
      %v1377 = vadd.f32 %v1010, %v1376
      %v1378 = vpop.f32.mrb[0].mxu0
      %v1379 = vadd.f32 %v1012, %v1378
      %v1380 = vpop.f32.mrb[0].mxu0
      %v1381 = vadd.f32 %v1014, %v1380
      %1382 = vmatprep.mubr.bf16.mxu0 0
      %1383 = vmatmul.mubr.bf16.gmra.mrb[0].mxu0 %v1247
      %v1384 = vpop.f32.mrb[0].mxu0
      %v1385 = vadd.f32 %v1018, %v1384
      %v1386 = vpop.f32.mrb[0].mxu0
      %v1387 = vadd.f32 %v1020, %v1386
      %v1388 = vpop.f32.mrb[0].mxu0
      %v1389 = vadd.f32 %v1022, %v1388
      %v1390 = vpop.f32.mrb[0].mxu0
      %v1391 = vadd.f32 %v1024, %v1390
      %1392 = vmatprep.mubr.bf16.mxu0 0
      %1393 = vmatmul.mubr.bf16.gmra.mrb[0].mxu0 %v1250
      %v1394 = vpop.f32.mrb[0].mxu0
      %v1395 = vadd.f32 %v1028, %v1394
      %v1396 = vpop.f32.mrb[0].mxu0
      %v1397 = vadd.f32 %v1030, %v1396
      %v1398 = vpop.f32.mrb[0].mxu0
      %v1399 = vadd.f32 %v1032, %v1398
      %v1400 = vpop.f32.mrb[0].mxu0
      %v1401 = vadd.f32 %v1034, %v1400
      %1402 = vmatprep.mubr.bf16.mxu0 0
      %1403 = vmatmul.mubr.bf16.gmra.mrb[0].mxu0 %v1253
      %v1404 = vpop.f32.mrb[0].mxu0
      %v1405 = vadd.f32 %v1038, %v1404
      %v1406 = vpop.f32.mrb[0].mxu0
      %v1407 = vadd.f32 %v1040, %v1406
      %v1408 = vpop.f32.mrb[0].mxu0
      %v1409 = vadd.f32 %v1042, %v1408
      %v1410 = vpop.f32.mrb[0].mxu0
      %v1411 = vadd.f32 %v1044, %v1410
      %1412 = vmatprep.mubr.bf16.mxu0 0
      %1413 = vmatmul.mubr.bf16.gmra.mrb[0].mxu0 %v1256
      %v1414 = vpop.f32.mrb[0].mxu0
      %v1415 = vadd.f32 %v1048, %v1414
      %v1416 = vpop.f32.mrb[0].mxu0
      %v1417 = vadd.f32 %v1050, %v1416
      %v1418 = vpop.f32.mrb[0].mxu0
      %v1419 = vadd.f32 %v1052, %v1418
      %v1420 = vpop.f32.mrb[0].mxu0
      %v1421 = vadd.f32 %v1054, %v1420
      %1422 = vmatprep.mubr.bf16.mxu0 0
      %1423 = vmatmul.mubr.bf16.gmra.mrb[0].mxu0 %v1259
      %v1424 = vpop.f32.mrb[0].mxu0
      %v1425 = vadd.f32 %v1058, %v1424
      %v1426 = vpop.f32.mrb[0].mxu0
      %v1427 = vadd.f32 %v1060, %v1426
      %v1428 = vpop.f32.mrb[0].mxu0
      %v1429 = vadd.f32 %v1062, %v1428
      %v1430 = vpop.f32.mrb[0].mxu0
      %v1431 = vadd.f32 %v1064, %v1430
      %1432 = vmatprep.mubr.bf16.mxu0 0
      %1433 = vmatmul.mubr.bf16.gmra.mrb[0].mxu0 %v1262
      %v1434 = vpop.f32.mrb[0].mxu0
      %v1435 = vadd.f32 %v1068, %v1434
      %v1436 = vpop.f32.mrb[0].mxu0
      %v1437 = vadd.f32 %v1070, %v1436
      %v1438 = vpop.f32.mrb[0].mxu0
      %v1439 = vadd.f32 %v1072, %v1438
      %v1440 = vpop.f32.mrb[0].mxu0
      %v1441 = vadd.f32 %v1074, %v1440
      %1442 = vmatprep.mubr.bf16.mxu0 0
      %1443 = vmatmul.mubr.bf16.gmra.mrb[0].mxu0 %v1265
      %v1444 = vpop.f32.mrb[0].mxu0
      %v1445 = vadd.f32 %v1078, %v1444
      %v1446 = vpop.f32.mrb[0].mxu0
      %v1447 = vadd.f32 %v1080, %v1446
      %v1448 = vpop.f32.mrb[0].mxu0
      %v1449 = vadd.f32 %v1082, %v1448
      %v1450 = vpop.f32.mrb[0].mxu0
      %v1451 = vadd.f32 %v1084, %v1450
      %1452 = vmatprep.mubr.bf16.mxu0 0
      %1453 = vmatmul.mubr.bf16.gmra.mrb[0].mxu0 %v1268
      %v1454 = vpop.f32.mrb[0].mxu0
      %v1455 = vadd.f32 %v1088, %v1454
      %v1456 = vpop.f32.mrb[0].mxu0
      %v1457 = vadd.f32 %v1090, %v1456
      %v1458 = vpop.f32.mrb[0].mxu0
      %v1459 = vadd.f32 %v1092, %v1458
      %v1460 = vpop.f32.mrb[0].mxu0
      %v1461 = vadd.f32 %v1094, %v1460
      %1462 = vmatprep.mubr.bf16.mxu0 0
      %1463 = vmatmul.mubr.bf16.gmra.mrb[0].mxu0 %v1271
      %v1464 = vpop.f32.mrb[0].mxu0
      %v1465 = vadd.f32 %v1098, %v1464
      %v1466 = vpop.f32.mrb[0].mxu0
      %v1467 = vadd.f32 %v1100, %v1466
      %v1468 = vpop.f32.mrb[0].mxu0
      %v1469 = vadd.f32 %v1102, %v1468
      %v1470 = vpop.f32.mrb[0].mxu0
      %v1471 = vadd.f32 %v1104, %v1470
      %1472 = vdwg.mxu0
      %v1473 = vld [vmem:[%s6] sm:$0xff]
      %v1474 = vld [vmem:[%s6 + $0x8] sm:$0xff]
      %v1475 = vld [vmem:[%s6 + $0x10] sm:$0xff]
      %v1476 = vld [vmem:[%s6 + $0x18] sm:$0xff]
      %v1477 = vld [vmem:[%s6 + $0x20] sm:$0xff]
      %v1478 = vld [vmem:[%s6 + $0x28] sm:$0xff]
      %v1479 = vld [vmem:[%s6 + $0x30] sm:$0xff]
      %v1480 = vld [vmem:[%s6 + $0x38] sm:$0xff]
      %v1481 = vld [vmem:[%s6 + $0x40] sm:$0xff]
      %v1482 = vld [vmem:[%s6 + $0x48] sm:$0xff]
      %v1483 = vld [vmem:[%s6 + $0x50] sm:$0xff]
      %v1484 = vld [vmem:[%s6 + $0x58] sm:$0xff]
      %v1485 = vld [vmem:[%s6 + $0x60] sm:$0xff]
      %v1486 = vld [vmem:[%s6 + $0x68] sm:$0xff]
      %v1487 = vld [vmem:[%s6 + $0x70] sm:$0xff]
      %v1488 = vld [vmem:[%s6 + $0x78] sm:$0xff]
      %v1489 = vld [vmem:[%s6 + $0x80] sm:$0xff]
      %v1490 = vld [vmem:[%s6 + $0x88] sm:$0xff]
      %v1491 = vld [vmem:[%s6 + $0x90] sm:$0xff]
      %v1492 = vld [vmem:[%s6 + $0x98] sm:$0xff]
      %v1493 = vld [vmem:[%s6 + $0xa0] sm:$0xff]
      %v1494 = vld [vmem:[%s6 + $0xa8] sm:$0xff]
      %v1495 = vld [vmem:[%s6 + $0xb0] sm:$0xff]
      %v1496 = vld [vmem:[%s6 + $0xb8] sm:$0xff]
      %v1497 = vld [vmem:[%s6 + $0xc0] sm:$0xff]
      %v1498 = vld [vmem:[%s6 + $0xc8] sm:$0xff]
      %v1499 = vld [vmem:[%s6 + $0xd0] sm:$0xff]
      %v1500 = vld [vmem:[%s6 + $0xd8] sm:$0xff]
      %v1501 = vld [vmem:[%s6 + $0xe0] sm:$0xff]
      %v1502 = vld [vmem:[%s6 + $0xe8] sm:$0xff]
      %v1503 = vld [vmem:[%s6 + $0xf0] sm:$0xff]
      %v1504 = vld [vmem:[%s6 + $0xf8] sm:$0xff]
      %1506 = vset.pattern.permute.xlu0 0
      %1507 = vperm.xlu0 %1506, %v1473
      %v1508 = vpop.permute.xlu0 %1507
      %1511 = vset.pattern.permute.xlu0 0
      %1512 = vperm.xlu0 %1511, %v1474
      %v1513 = vpop.permute.xlu0 %1512
      %1516 = vset.pattern.permute.xlu0 0
      %1517 = vperm.xlu0 %1516, %v1475
      %v1518 = vpop.permute.xlu0 %1517
      %1521 = vset.pattern.permute.xlu0 0
      %1522 = vperm.xlu0 %1521, %v1476
      %v1523 = vpop.permute.xlu0 %1522
      %1526 = vset.pattern.permute.xlu0 0
      %1527 = vperm.xlu0 %1526, %v1477
      %v1528 = vpop.permute.xlu0 %1527
      %1531 = vset.pattern.permute.xlu0 0
      %1532 = vperm.xlu0 %1531, %v1478
      %v1533 = vpop.permute.xlu0 %1532
      %1536 = vset.pattern.permute.xlu0 0
      %1537 = vperm.xlu0 %1536, %v1479
      %v1538 = vpop.permute.xlu0 %1537
      %1541 = vset.pattern.permute.xlu0 0
      %1542 = vperm.xlu0 %1541, %v1480
      %v1543 = vpop.permute.xlu0 %1542
      %1546 = vset.pattern.permute.xlu0 0
      %1547 = vperm.xlu0 %1546, %v1481
      %v1548 = vpop.permute.xlu0 %1547
      %1551 = vset.pattern.permute.xlu0 0
      %1552 = vperm.xlu0 %1551, %v1482
      %v1553 = vpop.permute.xlu0 %1552
      %1556 = vset.pattern.permute.xlu0 0
      %1557 = vperm.xlu0 %1556, %v1483
      %v1558 = vpop.permute.xlu0 %1557
      %1561 = vset.pattern.permute.xlu0 0
      %1562 = vperm.xlu0 %1561, %v1484
      %v1563 = vpop.permute.xlu0 %1562
      %1566 = vset.pattern.permute.xlu0 0
      %1567 = vperm.xlu0 %1566, %v1485
      %v1568 = vpop.permute.xlu0 %1567
      %1571 = vset.pattern.permute.xlu0 0
      %1572 = vperm.xlu0 %1571, %v1486
      %v1573 = vpop.permute.xlu0 %1572
      %1576 = vset.pattern.permute.xlu0 0
      %1577 = vperm.xlu0 %1576, %v1487
      %v1578 = vpop.permute.xlu0 %1577
      %1581 = vset.pattern.permute.xlu0 0
      %1582 = vperm.xlu0 %1581, %v1488
      %v1583 = vpop.permute.xlu0 %1582
      %1586 = vset.pattern.permute.xlu0 0
      %1587 = vperm.xlu0 %1586, %v1489
      %v1588 = vpop.permute.xlu0 %1587
      %1591 = vset.pattern.permute.xlu0 0
      %1592 = vperm.xlu0 %1591, %v1490
      %v1593 = vpop.permute.xlu0 %1592
      %1596 = vset.pattern.permute.xlu0 0
      %1597 = vperm.xlu0 %1596, %v1491
      %v1598 = vpop.permute.xlu0 %1597
      %1601 = vset.pattern.permute.xlu0 0
      %1602 = vperm.xlu0 %1601, %v1492
      %v1603 = vpop.permute.xlu0 %1602
      %1606 = vset.pattern.permute.xlu0 0
      %1607 = vperm.xlu0 %1606, %v1493
      %v1608 = vpop.permute.xlu0 %1607
      %1611 = vset.pattern.permute.xlu0 0
      %1612 = vperm.xlu0 %1611, %v1494
      %v1613 = vpop.permute.xlu0 %1612
      %1616 = vset.pattern.permute.xlu0 0
      %1617 = vperm.xlu0 %1616, %v1495
      %v1618 = vpop.permute.xlu0 %1617
      %1621 = vset.pattern.permute.xlu0 0
      %1622 = vperm.xlu0 %1621, %v1496
      %v1623 = vpop.permute.xlu0 %1622
      %1626 = vset.pattern.permute.xlu0 0
      %1627 = vperm.xlu0 %1626, %v1497
      %v1628 = vpop.permute.xlu0 %1627
      %1631 = vset.pattern.permute.xlu0 0
      %1632 = vperm.xlu0 %1631, %v1498
      %v1633 = vpop.permute.xlu0 %1632
      %1636 = vset.pattern.permute.xlu0 0
      %1637 = vperm.xlu0 %1636, %v1499
      %v1638 = vpop.permute.xlu0 %1637
      %1641 = vset.pattern.permute.xlu0 0
      %1642 = vperm.xlu0 %1641, %v1500
      %v1643 = vpop.permute.xlu0 %1642
      %1646 = vset.pattern.permute.xlu0 0
      %1647 = vperm.xlu0 %1646, %v1501
      %v1648 = vpop.permute.xlu0 %1647
      %1651 = vset.pattern.permute.xlu0 0
      %1652 = vperm.xlu0 %1651, %v1502
      %v1653 = vpop.permute.xlu0 %1652
      %1656 = vset.pattern.permute.xlu0 0
      %1657 = vperm.xlu0 %1656, %v1503
      %v1658 = vpop.permute.xlu0 %1657
      %1661 = vset.pattern.permute.xlu0 0
      %1662 = vperm.xlu0 %1661, %v1504
      %v1663 = vpop.permute.xlu0 %1662
      %v1665 = vadd.f32 %v1315, %v1508
      %v1666 = vadd.f32 %v1317, %v1508
      %v1667 = vadd.f32 %v1319, %v1513
      %v1668 = vadd.f32 %v1321, %v1513
      %v1669 = vadd.f32 %v1325, %v1518
      %v1670 = vadd.f32 %v1327, %v1518
      %v1671 = vadd.f32 %v1329, %v1523
      %v1672 = vadd.f32 %v1331, %v1523
      %v1673 = vadd.f32 %v1335, %v1528
      %v1674 = vadd.f32 %v1337, %v1528
      %v1675 = vadd.f32 %v1339, %v1533
      %v1676 = vadd.f32 %v1341, %v1533
      %v1677 = vadd.f32 %v1345, %v1538
      %v1678 = vadd.f32 %v1347, %v1538
      %v1679 = vadd.f32 %v1349, %v1543
      %v1680 = vadd.f32 %v1351, %v1543
      %v1681 = vadd.f32 %v1355, %v1548
      %v1682 = vadd.f32 %v1357, %v1548
      %v1683 = vadd.f32 %v1359, %v1553
      %v1684 = vadd.f32 %v1361, %v1553
      %v1685 = vadd.f32 %v1365, %v1558
      %v1686 = vadd.f32 %v1367, %v1558
      %v1687 = vadd.f32 %v1369, %v1563
      %v1688 = vadd.f32 %v1371, %v1563
      %v1689 = vadd.f32 %v1375, %v1568
      %v1690 = vadd.f32 %v1377, %v1568
      %v1691 = vadd.f32 %v1379, %v1573
      %v1692 = vadd.f32 %v1381, %v1573
      %v1693 = vadd.f32 %v1385, %v1578
      %v1694 = vadd.f32 %v1387, %v1578
      %v1695 = vadd.f32 %v1389, %v1583
      %v1696 = vadd.f32 %v1391, %v1583
      %v1697 = vadd.f32 %v1395, %v1588
      %v1698 = vadd.f32 %v1397, %v1588
      %v1699 = vadd.f32 %v1399, %v1593
      %v1700 = vadd.f32 %v1401, %v1593
      %v1701 = vadd.f32 %v1405, %v1598
      %v1702 = vadd.f32 %v1407, %v1598
      %v1703 = vadd.f32 %v1409, %v1603
      %v1704 = vadd.f32 %v1411, %v1603
      %v1705 = vadd.f32 %v1415, %v1608
      %v1706 = vadd.f32 %v1417, %v1608
      %v1707 = vadd.f32 %v1419, %v1613
      %v1708 = vadd.f32 %v1421, %v1613
      %v1709 = vadd.f32 %v1425, %v1618
      %v1710 = vadd.f32 %v1427, %v1618
      %v1711 = vadd.f32 %v1429, %v1623
      %v1712 = vadd.f32 %v1431, %v1623
      %v1713 = vadd.f32 %v1435, %v1628
      %v1714 = vadd.f32 %v1437, %v1628
      %v1715 = vadd.f32 %v1439, %v1633
      %v1716 = vadd.f32 %v1441, %v1633
      %v1717 = vadd.f32 %v1445, %v1638
      %v1718 = vadd.f32 %v1447, %v1638
      %v1719 = vadd.f32 %v1449, %v1643
      %v1720 = vadd.f32 %v1451, %v1643
      %v1721 = vadd.f32 %v1455, %v1648
      %v1722 = vadd.f32 %v1457, %v1648
      %v1723 = vadd.f32 %v1459, %v1653
      %v1724 = vadd.f32 %v1461, %v1653
      %v1725 = vadd.f32 %v1465, %v1658
      %v1726 = vadd.f32 %v1467, %v1658
      %v1727 = vadd.f32 %v1469, %v1663
      %v1728 = vadd.f32 %v1471, %v1663
      %v1729 = vmax.f32 %v1665, 0.0
      %v1730 = vmax.f32 %v1666, 0.0
      %v1731 = vmax.f32 %v1667, 0.0
      %v1732 = vmax.f32 %v1668, 0.0
      %v1733 = vmax.f32 %v1669, 0.0
      %v1734 = vmax.f32 %v1670, 0.0
      %v1735 = vmax.f32 %v1671, 0.0
      %v1736 = vmax.f32 %v1672, 0.0
      %v1737 = vmax.f32 %v1673, 0.0
      %v1738 = vmax.f32 %v1674, 0.0
      %v1739 = vmax.f32 %v1675, 0.0
      %v1740 = vmax.f32 %v1676, 0.0
      %v1741 = vmax.f32 %v1677, 0.0
      %v1742 = vmax.f32 %v1678, 0.0
      %v1743 = vmax.f32 %v1679, 0.0
      %v1744 = vmax.f32 %v1680, 0.0
      %v1745 = vmax.f32 %v1681, 0.0
      %v1746 = vmax.f32 %v1682, 0.0
      %v1747 = vmax.f32 %v1683, 0.0
      %v1748 = vmax.f32 %v1684, 0.0
      %v1749 = vmax.f32 %v1685, 0.0
      %v1750 = vmax.f32 %v1686, 0.0
      %v1751 = vmax.f32 %v1687, 0.0
      %v1752 = vmax.f32 %v1688, 0.0
      %v1753 = vmax.f32 %v1689, 0.0
      %v1754 = vmax.f32 %v1690, 0.0
      %v1755 = vmax.f32 %v1691, 0.0
      %v1756 = vmax.f32 %v1692, 0.0
      %v1757 = vmax.f32 %v1693, 0.0
      %v1758 = vmax.f32 %v1694, 0.0
      %v1759 = vmax.f32 %v1695, 0.0
      %v1760 = vmax.f32 %v1696, 0.0
      %v1761 = vmax.f32 %v1697, 0.0
      %v1762 = vmax.f32 %v1698, 0.0
      %v1763 = vmax.f32 %v1699, 0.0
      %v1764 = vmax.f32 %v1700, 0.0
      %v1765 = vmax.f32 %v1701, 0.0
      %v1766 = vmax.f32 %v1702, 0.0
      %v1767 = vmax.f32 %v1703, 0.0
      %v1768 = vmax.f32 %v1704, 0.0
      %v1769 = vmax.f32 %v1705, 0.0
      %v1770 = vmax.f32 %v1706, 0.0
      %v1771 = vmax.f32 %v1707, 0.0
      %v1772 = vmax.f32 %v1708, 0.0
      %v1773 = vmax.f32 %v1709, 0.0
      %v1774 = vmax.f32 %v1710, 0.0
      %v1775 = vmax.f32 %v1711, 0.0
      %v1776 = vmax.f32 %v1712, 0.0
      %v1777 = vmax.f32 %v1713, 0.0
      %v1778 = vmax.f32 %v1714, 0.0
      %v1779 = vmax.f32 %v1715, 0.0
      %v1780 = vmax.f32 %v1716, 0.0
      %v1781 = vmax.f32 %v1717, 0.0
      %v1782 = vmax.f32 %v1718, 0.0
      %v1783 = vmax.f32 %v1719, 0.0
      %v1784 = vmax.f32 %v1720, 0.0
      %v1785 = vmax.f32 %v1721, 0.0
      %v1786 = vmax.f32 %v1722, 0.0
      %v1787 = vmax.f32 %v1723, 0.0
      %v1788 = vmax.f32 %v1724, 0.0
      %v1789 = vmax.f32 %v1725, 0.0
      %v1790 = vmax.f32 %v1726, 0.0
      %v1791 = vmax.f32 %v1727, 0.0
      %v1792 = vmax.f32 %v1728, 0.0
      %v1793 = vld [vmem:[%s7] sm:$0xff]
      %v1794 = vld [vmem:[%s7 + $0x8] sm:$0xff]
      %v1795 = vld [vmem:[%s7 + $0x10] sm:$0xff]
      %v1796 = vld [vmem:[%s7 + $0x18] sm:$0xff]
      %v1797 = vld [vmem:[%s7 + $0x20] sm:$0xff]
      %v1798 = vld [vmem:[%s7 + $0x28] sm:$0xff]
      %v1799 = vld [vmem:[%s7 + $0x30] sm:$0xff]
      %v1800 = vld [vmem:[%s7 + $0x38] sm:$0xff]
      %v1801 = vld [vmem:[%s7 + $0x40] sm:$0xff]
      %v1802 = vld [vmem:[%s7 + $0x48] sm:$0xff]
      %v1803 = vld [vmem:[%s7 + $0x50] sm:$0xff]
      %v1804 = vld [vmem:[%s7 + $0x58] sm:$0xff]
      %v1805 = vld [vmem:[%s7 + $0x60] sm:$0xff]
      %v1806 = vld [vmem:[%s7 + $0x68] sm:$0xff]
      %v1807 = vld [vmem:[%s7 + $0x70] sm:$0xff]
      %v1808 = vld [vmem:[%s7 + $0x78] sm:$0xff]
      %v1809 = vld [vmem:[%s7 + $0x80] sm:$0xff]
      %v1810 = vld [vmem:[%s7 + $0x88] sm:$0xff]
      %v1811 = vld [vmem:[%s7 + $0x90] sm:$0xff]
      %v1812 = vld [vmem:[%s7 + $0x98] sm:$0xff]
      %v1813 = vld [vmem:[%s7 + $0xa0] sm:$0xff]
      %v1814 = vld [vmem:[%s7 + $0xa8] sm:$0xff]
      %v1815 = vld [vmem:[%s7 + $0xb0] sm:$0xff]
      %v1816 = vld [vmem:[%s7 + $0xb8] sm:$0xff]
      %v1817 = vld [vmem:[%s7 + $0xc0] sm:$0xff]
      %v1818 = vld [vmem:[%s7 + $0xc8] sm:$0xff]
      %v1819 = vld [vmem:[%s7 + $0xd0] sm:$0xff]
      %v1820 = vld [vmem:[%s7 + $0xd8] sm:$0xff]
      %v1821 = vld [vmem:[%s7 + $0xe0] sm:$0xff]
      %v1822 = vld [vmem:[%s7 + $0xe8] sm:$0xff]
      %v1823 = vld [vmem:[%s7 + $0xf0] sm:$0xff]
      %v1824 = vld [vmem:[%s7 + $0xf8] sm:$0xff]
      %v1825 = vpack.c.bf16 %v1731, %v1729
      %v1826 = vpack.c.bf16 %v1732, %v1730
      %v1827 = vpack.c.bf16 %v1735, %v1733
      %v1828 = vpack.c.bf16 %v1736, %v1734
      %v1829 = vpack.c.bf16 %v1739, %v1737
      %v1830 = vpack.c.bf16 %v1740, %v1738
      %v1831 = vpack.c.bf16 %v1743, %v1741
      %v1832 = vpack.c.bf16 %v1744, %v1742
      %v1833 = vpack.c.bf16 %v1747, %v1745
      %v1834 = vpack.c.bf16 %v1748, %v1746
      %v1835 = vpack.c.bf16 %v1751, %v1749
      %v1836 = vpack.c.bf16 %v1752, %v1750
      %v1837 = vpack.c.bf16 %v1755, %v1753
      %v1838 = vpack.c.bf16 %v1756, %v1754
      %v1839 = vpack.c.bf16 %v1759, %v1757
      %v1840 = vpack.c.bf16 %v1760, %v1758
      %v1841 = vpack.c.bf16 %v1763, %v1761
      %v1842 = vpack.c.bf16 %v1764, %v1762
      %v1843 = vpack.c.bf16 %v1767, %v1765
      %v1844 = vpack.c.bf16 %v1768, %v1766
      %v1845 = vpack.c.bf16 %v1771, %v1769
      %v1846 = vpack.c.bf16 %v1772, %v1770
      %v1847 = vpack.c.bf16 %v1775, %v1773
      %v1848 = vpack.c.bf16 %v1776, %v1774
      %v1849 = vpack.c.bf16 %v1779, %v1777
      %v1850 = vpack.c.bf16 %v1780, %v1778
      %v1851 = vpack.c.bf16 %v1783, %v1781
      %v1852 = vpack.c.bf16 %v1784, %v1782
      %v1853 = vpack.c.bf16 %v1787, %v1785
      %v1854 = vpack.c.bf16 %v1788, %v1786
      %v1855 = vpack.c.bf16 %v1791, %v1789
      %v1856 = vpack.c.bf16 %v1792, %v1790
      %v1857 = vld [vmem:[%s8] sm:$0xff]
      %v1858 = vld [vmem:[%s8 + $0x8] sm:$0xff]
      %v1859 = vld [vmem:[%s8 + $0x10] sm:$0xff]
      %v1860 = vld [vmem:[%s8 + $0x18] sm:$0xff]
      %v1861 = vld [vmem:[%s8 + $0x20] sm:$0xff]
      %v1862 = vld [vmem:[%s8 + $0x28] sm:$0xff]
      %v1863 = vld [vmem:[%s8 + $0x30] sm:$0xff]
      %v1864 = vld [vmem:[%s8 + $0x38] sm:$0xff]
      %v1865 = vld [vmem:[%s8 + $0x40] sm:$0xff]
      %v1866 = vld [vmem:[%s8 + $0x48] sm:$0xff]
      %v1867 = vld [vmem:[%s8 + $0x50] sm:$0xff]
      %v1868 = vld [vmem:[%s8 + $0x58] sm:$0xff]
      %v1869 = vld [vmem:[%s8 + $0x60] sm:$0xff]
      %v1870 = vld [vmem:[%s8 + $0x68] sm:$0xff]
      %v1871 = vld [vmem:[%s8 + $0x70] sm:$0xff]
      %v1872 = vld [vmem:[%s8 + $0x78] sm:$0xff]
      %v1873 = vld [vmem:[%s8 + $0x80] sm:$0xff]
      %v1874 = vld [vmem:[%s8 + $0x88] sm:$0xff]
      %v1875 = vld [vmem:[%s8 + $0x90] sm:$0xff]
      %v1876 = vld [vmem:[%s8 + $0x98] sm:$0xff]
      %v1877 = vld [vmem:[%s8 + $0xa0] sm:$0xff]
      %v1878 = vld [vmem:[%s8 + $0xa8] sm:$0xff]
      %v1879 = vld [vmem:[%s8 + $0xb0] sm:$0xff]
      %v1880 = vld [vmem:[%s8 + $0xb8] sm:$0xff]
      %v1881 = vld [vmem:[%s8 + $0xc0] sm:$0xff]
      %v1882 = vld [vmem:[%s8 + $0xc8] sm:$0xff]
      %v1883 = vld [vmem:[%s8 + $0xd0] sm:$0xff]
      %v1884 = vld [vmem:[%s8 + $0xd8] sm:$0xff]
      %v1885 = vld [vmem:[%s8 + $0xe0] sm:$0xff]
      %v1886 = vld [vmem:[%s8 + $0xe8] sm:$0xff]
      %v1887 = vld [vmem:[%s8 + $0xf0] sm:$0xff]
      %v1888 = vld [vmem:[%s8 + $0xf8] sm:$0xff]
      %1890 = vset.pattern.permute.xlu0 0
      %1891 = vperm.xlu0 %1890, %v1857
      %v1892 = vpop.permute.xlu0 %1891
      %1895 = vset.pattern.permute.xlu0 0
      %1896 = vperm.xlu0 %1895, %v1858
      %v1897 = vpop.permute.xlu0 %1896
      %1900 = vset.pattern.permute.xlu0 0
      %1901 = vperm.xlu0 %1900, %v1859
      %v1902 = vpop.permute.xlu0 %1901
      %1905 = vset.pattern.permute.xlu0 0
      %1906 = vperm.xlu0 %1905, %v1860
      %v1907 = vpop.permute.xlu0 %1906
      %1910 = vset.pattern.permute.xlu0 0
      %1911 = vperm.xlu0 %1910, %v1861
      %v1912 = vpop.permute.xlu0 %1911
      %1915 = vset.pattern.permute.xlu0 0
      %1916 = vperm.xlu0 %1915, %v1862
      %v1917 = vpop.permute.xlu0 %1916
      %1920 = vset.pattern.permute.xlu0 0
      %1921 = vperm.xlu0 %1920, %v1863
      %v1922 = vpop.permute.xlu0 %1921
      %1925 = vset.pattern.permute.xlu0 0
      %1926 = vperm.xlu0 %1925, %v1864
      %v1927 = vpop.permute.xlu0 %1926
      %1930 = vset.pattern.permute.xlu0 0
      %1931 = vperm.xlu0 %1930, %v1865
      %v1932 = vpop.permute.xlu0 %1931
      %1935 = vset.pattern.permute.xlu0 0
      %1936 = vperm.xlu0 %1935, %v1866
      %v1937 = vpop.permute.xlu0 %1936
      %1940 = vset.pattern.permute.xlu0 0
      %1941 = vperm.xlu0 %1940, %v1867
      %v1942 = vpop.permute.xlu0 %1941
      %1945 = vset.pattern.permute.xlu0 0
      %1946 = vperm.xlu0 %1945, %v1868
      %v1947 = vpop.permute.xlu0 %1946
      %1950 = vset.pattern.permute.xlu0 0
      %1951 = vperm.xlu0 %1950, %v1869
      %v1952 = vpop.permute.xlu0 %1951
      %1955 = vset.pattern.permute.xlu0 0
      %1956 = vperm.xlu0 %1955, %v1870
      %v1957 = vpop.permute.xlu0 %1956
      %1960 = vset.pattern.permute.xlu0 0
      %1961 = vperm.xlu0 %1960, %v1871
      %v1962 = vpop.permute.xlu0 %1961
      %1965 = vset.pattern.permute.xlu0 0
      %1966 = vperm.xlu0 %1965, %v1872
      %v1967 = vpop.permute.xlu0 %1966
      %1970 = vset.pattern.permute.xlu0 0
      %1971 = vperm.xlu0 %1970, %v1873
      %v1972 = vpop.permute.xlu0 %1971
      %1975 = vset.pattern.permute.xlu0 0
      %1976 = vperm.xlu0 %1975, %v1874
      %v1977 = vpop.permute.xlu0 %1976
      %1980 = vset.pattern.permute.xlu0 0
      %1981 = vperm.xlu0 %1980, %v1875
      %v1982 = vpop.permute.xlu0 %1981
      %1985 = vset.pattern.permute.xlu0 0
      %1986 = vperm.xlu0 %1985, %v1876
      %v1987 = vpop.permute.xlu0 %1986
      %1990 = vset.pattern.permute.xlu0 0
      %1991 = vperm.xlu0 %1990, %v1877
      %v1992 = vpop.permute.xlu0 %1991
      %1995 = vset.pattern.permute.xlu0 0
      %1996 = vperm.xlu0 %1995, %v1878
      %v1997 = vpop.permute.xlu0 %1996
      %2000 = vset.pattern.permute.xlu0 0
      %2001 = vperm.xlu0 %2000, %v1879
      %v2002 = vpop.permute.xlu0 %2001
      %2005 = vset.pattern.permute.xlu0 0
      %2006 = vperm.xlu0 %2005, %v1880
      %v2007 = vpop.permute.xlu0 %2006
      %2010 = vset.pattern.permute.xlu0 0
      %2011 = vperm.xlu0 %2010, %v1881
      %v2012 = vpop.permute.xlu0 %2011
      %2015 = vset.pattern.permute.xlu0 0
      %2016 = vperm.xlu0 %2015, %v1882
      %v2017 = vpop.permute.xlu0 %2016
      %2020 = vset.pattern.permute.xlu0 0
      %2021 = vperm.xlu0 %2020, %v1883
      %v2022 = vpop.permute.xlu0 %2021
      %2025 = vset.pattern.permute.xlu0 0
      %2026 = vperm.xlu0 %2025, %v1884
      %v2027 = vpop.permute.xlu0 %2026
      %2030 = vset.pattern.permute.xlu0 0
      %2031 = vperm.xlu0 %2030, %v1885
      %v2032 = vpop.permute.xlu0 %2031
      %2035 = vset.pattern.permute.xlu0 0
      %2036 = vperm.xlu0 %2035, %v1886
      %v2037 = vpop.permute.xlu0 %2036
      %2040 = vset.pattern.permute.xlu0 0
      %2041 = vperm.xlu0 %2040, %v1887
      %v2042 = vpop.permute.xlu0 %2041
      %2045 = vset.pattern.permute.xlu0 0
      %2046 = vperm.xlu0 %2045, %v1888
      %v2047 = vpop.permute.xlu0 %2046
      %v2081 = vunpack.c.l.b16 %v1793
      %v2082 = vunpack.c.h.b16 %v1793
      %v2083 = vunpack.c.l.b16 %v1794
      %v2084 = vunpack.c.h.b16 %v1794
      %v2085 = vunpack.c.l.b16 %v1795
      %v2086 = vunpack.c.h.b16 %v1795
      %v2087 = vunpack.c.l.b16 %v1796
      %v2088 = vunpack.c.h.b16 %v1796
      %v2089 = vunpack.c.l.b16 %v1797
      %v2090 = vunpack.c.h.b16 %v1797
      %v2091 = vunpack.c.l.b16 %v1798
      %v2092 = vunpack.c.h.b16 %v1798
      %v2093 = vunpack.c.l.b16 %v1799
      %v2094 = vunpack.c.h.b16 %v1799
      %v2095 = vunpack.c.l.b16 %v1800
      %v2096 = vunpack.c.h.b16 %v1800
      %v2097 = vunpack.c.l.b16 %v1801
      %v2098 = vunpack.c.h.b16 %v1801
      %v2099 = vunpack.c.l.b16 %v1802
      %v2100 = vunpack.c.h.b16 %v1802
      %v2101 = vunpack.c.l.b16 %v1803
      %v2102 = vunpack.c.h.b16 %v1803
      %v2103 = vunpack.c.l.b16 %v1804
      %v2104 = vunpack.c.h.b16 %v1804
      %v2105 = vunpack.c.l.b16 %v1805
      %v2106 = vunpack.c.h.b16 %v1805
      %v2107 = vunpack.c.l.b16 %v1806
      %v2108 = vunpack.c.h.b16 %v1806
      %v2109 = vunpack.c.l.b16 %v1807
      %v2110 = vunpack.c.h.b16 %v1807
      %v2111 = vunpack.c.l.b16 %v1808
      %v2112 = vunpack.c.h.b16 %v1808
      %v2113 = vunpack.c.l.b16 %v1809
      %v2114 = vunpack.c.h.b16 %v1809
      %v2115 = vunpack.c.l.b16 %v1810
      %v2116 = vunpack.c.h.b16 %v1810
      %v2117 = vunpack.c.l.b16 %v1811
      %v2118 = vunpack.c.h.b16 %v1811
      %v2119 = vunpack.c.l.b16 %v1812
      %v2120 = vunpack.c.h.b16 %v1812
      %v2121 = vunpack.c.l.b16 %v1813
      %v2122 = vunpack.c.h.b16 %v1813
      %v2123 = vunpack.c.l.b16 %v1814
      %v2124 = vunpack.c.h.b16 %v1814
      %v2125 = vunpack.c.l.b16 %v1815
      %v2126 = vunpack.c.h.b16 %v1815
      %v2127 = vunpack.c.l.b16 %v1816
      %v2128 = vunpack.c.h.b16 %v1816
      %v2129 = vunpack.c.l.b16 %v1817
      %v2130 = vunpack.c.h.b16 %v1817
      %v2131 = vunpack.c.l.b16 %v1818
      %v2132 = vunpack.c.h.b16 %v1818
      %v2133 = vunpack.c.l.b16 %v1819
      %v2134 = vunpack.c.h.b16 %v1819
      %v2135 = vunpack.c.l.b16 %v1820
      %v2136 = vunpack.c.h.b16 %v1820
      %v2137 = vunpack.c.l.b16 %v1821
      %v2138 = vunpack.c.h.b16 %v1821
      %v2139 = vunpack.c.l.b16 %v1822
      %v2140 = vunpack.c.h.b16 %v1822
      %v2141 = vunpack.c.l.b16 %v1823
      %v2142 = vunpack.c.h.b16 %v1823
      %v2143 = vunpack.c.l.b16 %v1824
      %v2144 = vunpack.c.h.b16 %v1824
      %v2145 = vpack.c.b16 %v2083, %v2081
      %v2146 = vpack.c.b16 %v2084, %v2082
      %v2147 = vpack.c.b16 %v2087, %v2085
      %v2148 = vpack.c.b16 %v2088, %v2086
      %v2149 = vpack.c.b16 %v2091, %v2089
      %v2150 = vpack.c.b16 %v2092, %v2090
      %v2151 = vpack.c.b16 %v2095, %v2093
      %v2152 = vpack.c.b16 %v2096, %v2094
      %v2153 = vpack.c.b16 %v2099, %v2097
      %v2154 = vpack.c.b16 %v2100, %v2098
      %v2155 = vpack.c.b16 %v2103, %v2101
      %v2156 = vpack.c.b16 %v2104, %v2102
      %v2157 = vpack.c.b16 %v2107, %v2105
      %v2158 = vpack.c.b16 %v2108, %v2106
      %v2159 = vpack.c.b16 %v2111, %v2109
      %v2160 = vpack.c.b16 %v2112, %v2110
      %v2161 = vpack.c.b16 %v2115, %v2113
      %v2162 = vpack.c.b16 %v2116, %v2114
      %v2163 = vpack.c.b16 %v2119, %v2117
      %v2164 = vpack.c.b16 %v2120, %v2118
      %v2165 = vpack.c.b16 %v2123, %v2121
      %v2166 = vpack.c.b16 %v2124, %v2122
      %v2167 = vpack.c.b16 %v2127, %v2125
      %v2168 = vpack.c.b16 %v2128, %v2126
      %v2169 = vpack.c.b16 %v2131, %v2129
      %v2170 = vpack.c.b16 %v2132, %v2130
      %v2171 = vpack.c.b16 %v2135, %v2133
      %v2172 = vpack.c.b16 %v2136, %v2134
      %v2173 = vpack.c.b16 %v2139, %v2137
      %v2174 = vpack.c.b16 %v2140, %v2138
      %v2175 = vpack.c.b16 %v2143, %v2141
      %v2176 = vpack.c.b16 %v2144, %v2142
      %2209 = vmatprep.subr.bf16.mxu0 %v1826
      %2210 = vmatpush1.bf16.msra.mxu0 %v1825
      %2211 = vmatprep.subr.bf16.mxu0 %v1828
      %2212 = vmatpush1.bf16.msra.mxu0 %v1827
      %2213 = vmatprep.subr.bf16.mxu0 %v1830
      %2214 = vmatpush1.bf16.msra.mxu0 %v1829
      %2215 = vmatprep.subr.bf16.mxu0 %v1832
      %2216 = vmatpush1.bf16.msra.mxu0 %v1831
      %2217 = vmatprep.subr.bf16.mxu0 %v1834
      %2218 = vmatpush1.bf16.msra.mxu0 %v1833
      %2219 = vmatprep.subr.bf16.mxu0 %v1836
      %2220 = vmatpush1.bf16.msra.mxu0 %v1835
      %2221 = vmatprep.subr.bf16.mxu0 %v1838
      %2222 = vmatpush1.bf16.msra.mxu0 %v1837
      %2223 = vmatprep.subr.bf16.mxu0 %v1840
      %2224 = vmatpush1.bf16.msra.mxu0 %v1839
      %2225 = vmatprep.subr.bf16.mxu0 %v1842
      %2226 = vmatpush1.bf16.msra.mxu0 %v1841
      %2227 = vmatprep.subr.bf16.mxu0 %v1844
      %2228 = vmatpush1.bf16.msra.mxu0 %v1843
      %2229 = vmatprep.subr.bf16.mxu0 %v1846
      %2230 = vmatpush1.bf16.msra.mxu0 %v1845
      %2231 = vmatprep.subr.bf16.mxu0 %v1848
      %2232 = vmatpush1.bf16.msra.mxu0 %v1847
      %2233 = vmatprep.subr.bf16.mxu0 %v1850
      %2234 = vmatpush1.bf16.msra.mxu0 %v1849
      %2235 = vmatprep.subr.bf16.mxu0 %v1852
      %2236 = vmatpush1.bf16.msra.mxu0 %v1851
      %2237 = vmatprep.subr.bf16.mxu0 %v1854
      %2238 = vmatpush1.bf16.msra.mxu0 %v1853
      %2239 = vmatprep.subr.bf16.mxu0 %v1856
      %2240 = vmatpush1.bf16.msra.mxu0 %v1855
      %2241 = vmatprep.mubr.bf16.mxu0 %v2146
      %2242 = vmatmul.mubr.bf16.gmra.mrb[0].mxu0 %v2145
      %v2243 = vpop.f32.mrb[0].mxu0
      %v2244 = vadd.f32 %v1892, %v2243
      %v2245 = vpop.f32.mrb[0].mxu0
      %v2246 = vadd.f32 %v1892, %v2245
      %v2247 = vpop.f32.mrb[0].mxu0
      %v2248 = vadd.f32 %v1897, %v2247
      %v2249 = vpop.f32.mrb[0].mxu0
      %v2250 = vadd.f32 %v1897, %v2249
      %2251 = vmatprep.mubr.bf16.mxu0 %v2148
      %2252 = vmatmul.mubr.bf16.gmra.mrb[0].mxu0 %v2147
      %v2253 = vpop.f32.mrb[0].mxu0
      %v2254 = vadd.f32 %v1902, %v2253
      %v2255 = vpop.f32.mrb[0].mxu0
      %v2256 = vadd.f32 %v1902, %v2255
      %v2257 = vpop.f32.mrb[0].mxu0
      %v2258 = vadd.f32 %v1907, %v2257
      %v2259 = vpop.f32.mrb[0].mxu0
      %v2260 = vadd.f32 %v1907, %v2259
      %2261 = vmatprep.mubr.bf16.mxu0 %v2150
      %2262 = vmatmul.mubr.bf16.gmra.mrb[0].mxu0 %v2149
      %v2263 = vpop.f32.mrb[0].mxu0
      %v2264 = vadd.f32 %v1912, %v2263
      %v2265 = vpop.f32.mrb[0].mxu0
      %v2266 = vadd.f32 %v1912, %v2265
      %v2267 = vpop.f32.mrb[0].mxu0
      %v2268 = vadd.f32 %v1917, %v2267
      %v2269 = vpop.f32.mrb[0].mxu0
      %v2270 = vadd.f32 %v1917, %v2269
      %2271 = vmatprep.mubr.bf16.mxu0 %v2152
      %2272 = vmatmul.mubr.bf16.gmra.mrb[0].mxu0 %v2151
      %v2273 = vpop.f32.mrb[0].mxu0
      %v2274 = vadd.f32 %v1922, %v2273
      %v2275 = vpop.f32.mrb[0].mxu0
      %v2276 = vadd.f32 %v1922, %v2275
      %v2277 = vpop.f32.mrb[0].mxu0
      %v2278 = vadd.f32 %v1927, %v2277
      %v2279 = vpop.f32.mrb[0].mxu0
      %v2280 = vadd.f32 %v1927, %v2279
      %2281 = vmatprep.mubr.bf16.mxu0 %v2154
      %2282 = vmatmul.mubr.bf16.gmra.mrb[0].mxu0 %v2153
      %v2283 = vpop.f32.mrb[0].mxu0
      %v2284 = vadd.f32 %v1932, %v2283
      %v2285 = vpop.f32.mrb[0].mxu0
      %v2286 = vadd.f32 %v1932, %v2285
      %v2287 = vpop.f32.mrb[0].mxu0
      %v2288 = vadd.f32 %v1937, %v2287
      %v2289 = vpop.f32.mrb[0].mxu0
      %v2290 = vadd.f32 %v1937, %v2289
      %2291 = vmatprep.mubr.bf16.mxu0 %v2156
      %2292 = vmatmul.mubr.bf16.gmra.mrb[0].mxu0 %v2155
      %v2293 = vpop.f32.mrb[0].mxu0
      %v2294 = vadd.f32 %v1942, %v2293
      %v2295 = vpop.f32.mrb[0].mxu0
      %v2296 = vadd.f32 %v1942, %v2295
      %v2297 = vpop.f32.mrb[0].mxu0
      %v2298 = vadd.f32 %v1947, %v2297
      %v2299 = vpop.f32.mrb[0].mxu0
      %v2300 = vadd.f32 %v1947, %v2299
      %2301 = vmatprep.mubr.bf16.mxu0 %v2158
      %2302 = vmatmul.mubr.bf16.gmra.mrb[0].mxu0 %v2157
      %v2303 = vpop.f32.mrb[0].mxu0
      %v2304 = vadd.f32 %v1952, %v2303
      %v2305 = vpop.f32.mrb[0].mxu0
      %v2306 = vadd.f32 %v1952, %v2305
      %v2307 = vpop.f32.mrb[0].mxu0
      %v2308 = vadd.f32 %v1957, %v2307
      %v2309 = vpop.f32.mrb[0].mxu0
      %v2310 = vadd.f32 %v1957, %v2309
      %2311 = vmatprep.mubr.bf16.mxu0 %v2160
      %2312 = vmatmul.mubr.bf16.gmra.mrb[0].mxu0 %v2159
      %v2313 = vpop.f32.mrb[0].mxu0
      %v2314 = vadd.f32 %v1962, %v2313
      %v2315 = vpop.f32.mrb[0].mxu0
      %v2316 = vadd.f32 %v1962, %v2315
      %v2317 = vpop.f32.mrb[0].mxu0
      %v2318 = vadd.f32 %v1967, %v2317
      %v2319 = vpop.f32.mrb[0].mxu0
      %v2320 = vadd.f32 %v1967, %v2319
      %2321 = vmatprep.mubr.bf16.mxu0 %v2162
      %2322 = vmatmul.mubr.bf16.gmra.mrb[0].mxu0 %v2161
      %v2323 = vpop.f32.mrb[0].mxu0
      %v2324 = vadd.f32 %v1972, %v2323
      %v2325 = vpop.f32.mrb[0].mxu0
      %v2326 = vadd.f32 %v1972, %v2325
      %v2327 = vpop.f32.mrb[0].mxu0
      %v2328 = vadd.f32 %v1977, %v2327
      %v2329 = vpop.f32.mrb[0].mxu0
      %v2330 = vadd.f32 %v1977, %v2329
      %2331 = vmatprep.mubr.bf16.mxu0 %v2164
      %2332 = vmatmul.mubr.bf16.gmra.mrb[0].mxu0 %v2163
      %v2333 = vpop.f32.mrb[0].mxu0
      %v2334 = vadd.f32 %v1982, %v2333
      %v2335 = vpop.f32.mrb[0].mxu0
      %v2336 = vadd.f32 %v1982, %v2335
      %v2337 = vpop.f32.mrb[0].mxu0
      %v2338 = vadd.f32 %v1987, %v2337
      %v2339 = vpop.f32.mrb[0].mxu0
      %v2340 = vadd.f32 %v1987, %v2339
      %2341 = vmatprep.mubr.bf16.mxu0 %v2166
      %2342 = vmatmul.mubr.bf16.gmra.mrb[0].mxu0 %v2165
      %v2343 = vpop.f32.mrb[0].mxu0
      %v2344 = vadd.f32 %v1992, %v2343
      %v2345 = vpop.f32.mrb[0].mxu0
      %v2346 = vadd.f32 %v1992, %v2345
      %v2347 = vpop.f32.mrb[0].mxu0
      %v2348 = vadd.f32 %v1997, %v2347
      %v2349 = vpop.f32.mrb[0].mxu0
      %v2350 = vadd.f32 %v1997, %v2349
      %2351 = vmatprep.mubr.bf16.mxu0 %v2168
      %2352 = vmatmul.mubr.bf16.gmra.mrb[0].mxu0 %v2167
      %v2353 = vpop.f32.mrb[0].mxu0
      %v2354 = vadd.f32 %v2002, %v2353
      %v2355 = vpop.f32.mrb[0].mxu0
      %v2356 = vadd.f32 %v2002, %v2355
      %v2357 = vpop.f32.mrb[0].mxu0
      %v2358 = vadd.f32 %v2007, %v2357
      %v2359 = vpop.f32.mrb[0].mxu0
      %v2360 = vadd.f32 %v2007, %v2359
      %2361 = vmatprep.mubr.bf16.mxu0 %v2170
      %2362 = vmatmul.mubr.bf16.gmra.mrb[0].mxu0 %v2169
      %v2363 = vpop.f32.mrb[0].mxu0
      %v2364 = vadd.f32 %v2012, %v2363
      %v2365 = vpop.f32.mrb[0].mxu0
      %v2366 = vadd.f32 %v2012, %v2365
      %v2367 = vpop.f32.mrb[0].mxu0
      %v2368 = vadd.f32 %v2017, %v2367
      %v2369 = vpop.f32.mrb[0].mxu0
      %v2370 = vadd.f32 %v2017, %v2369
      %2371 = vmatprep.mubr.bf16.mxu0 %v2172
      %2372 = vmatmul.mubr.bf16.gmra.mrb[0].mxu0 %v2171
      %v2373 = vpop.f32.mrb[0].mxu0
      %v2374 = vadd.f32 %v2022, %v2373
      %v2375 = vpop.f32.mrb[0].mxu0
      %v2376 = vadd.f32 %v2022, %v2375
      %v2377 = vpop.f32.mrb[0].mxu0
      %v2378 = vadd.f32 %v2027, %v2377
      %v2379 = vpop.f32.mrb[0].mxu0
      %v2380 = vadd.f32 %v2027, %v2379
      %2381 = vmatprep.mubr.bf16.mxu0 %v2174
      %2382 = vmatmul.mubr.bf16.gmra.mrb[0].mxu0 %v2173
      %v2383 = vpop.f32.mrb[0].mxu0
      %v2384 = vadd.f32 %v2032, %v2383
      %v2385 = vpop.f32.mrb[0].mxu0
      %v2386 = vadd.f32 %v2032, %v2385
      %v2387 = vpop.f32.mrb[0].mxu0
      %v2388 = vadd.f32 %v2037, %v2387
      %v2389 = vpop.f32.mrb[0].mxu0
      %v2390 = vadd.f32 %v2037, %v2389
      %2391 = vmatprep.mubr.bf16.mxu0 %v2176
      %2392 = vmatmul.mubr.bf16.gmra.mrb[0].mxu0 %v2175
      %v2393 = vpop.f32.mrb[0].mxu0
      %v2394 = vadd.f32 %v2042, %v2393
      %v2395 = vpop.f32.mrb[0].mxu0
      %v2396 = vadd.f32 %v2042, %v2395
      %v2397 = vpop.f32.mrb[0].mxu0
      %v2398 = vadd.f32 %v2047, %v2397
      %v2399 = vpop.f32.mrb[0].mxu0
      %v2400 = vadd.f32 %v2047, %v2399
      %2401 = vdwg.mxu0
      %v2402 = vmax.f32 %v2244, 0.0
      %v2403 = vmax.f32 %v2246, 0.0
      %v2404 = vmax.f32 %v2248, 0.0
      %v2405 = vmax.f32 %v2250, 0.0
      %v2406 = vmax.f32 %v2254, 0.0
      %v2407 = vmax.f32 %v2256, 0.0
      %v2408 = vmax.f32 %v2258, 0.0
      %v2409 = vmax.f32 %v2260, 0.0
      %v2410 = vmax.f32 %v2264, 0.0
      %v2411 = vmax.f32 %v2266, 0.0
      %v2412 = vmax.f32 %v2268, 0.0
      %v2413 = vmax.f32 %v2270, 0.0
      %v2414 = vmax.f32 %v2274, 0.0
      %v2415 = vmax.f32 %v2276, 0.0
      %v2416 = vmax.f32 %v2278, 0.0
      %v2417 = vmax.f32 %v2280, 0.0
      %v2418 = vmax.f32 %v2284, 0.0
      %v2419 = vmax.f32 %v2286, 0.0
      %v2420 = vmax.f32 %v2288, 0.0
      %v2421 = vmax.f32 %v2290, 0.0
      %v2422 = vmax.f32 %v2294, 0.0
      %v2423 = vmax.f32 %v2296, 0.0
      %v2424 = vmax.f32 %v2298, 0.0
      %v2425 = vmax.f32 %v2300, 0.0
      %v2426 = vmax.f32 %v2304, 0.0
      %v2427 = vmax.f32 %v2306, 0.0
      %v2428 = vmax.f32 %v2308, 0.0
      %v2429 = vmax.f32 %v2310, 0.0
      %v2430 = vmax.f32 %v2314, 0.0
      %v2431 = vmax.f32 %v2316, 0.0
      %v2432 = vmax.f32 %v2318, 0.0
      %v2433 = vmax.f32 %v2320, 0.0
      %v2434 = vmax.f32 %v2324, 0.0
      %v2435 = vmax.f32 %v2326, 0.0
      %v2436 = vmax.f32 %v2328, 0.0
      %v2437 = vmax.f32 %v2330, 0.0
      %v2438 = vmax.f32 %v2334, 0.0
      %v2439 = vmax.f32 %v2336, 0.0
      %v2440 = vmax.f32 %v2338, 0.0
      %v2441 = vmax.f32 %v2340, 0.0
      %v2442 = vmax.f32 %v2344, 0.0
      %v2443 = vmax.f32 %v2346, 0.0
      %v2444 = vmax.f32 %v2348, 0.0
      %v2445 = vmax.f32 %v2350, 0.0
      %v2446 = vmax.f32 %v2354, 0.0
      %v2447 = vmax.f32 %v2356, 0.0
      %v2448 = vmax.f32 %v2358, 0.0
      %v2449 = vmax.f32 %v2360, 0.0
      %v2450 = vmax.f32 %v2364, 0.0
      %v2451 = vmax.f32 %v2366, 0.0
      %v2452 = vmax.f32 %v2368, 0.0
      %v2453 = vmax.f32 %v2370, 0.0
      %v2454 = vmax.f32 %v2374, 0.0
      %v2455 = vmax.f32 %v2376, 0.0
      %v2456 = vmax.f32 %v2378, 0.0
      %v2457 = vmax.f32 %v2380, 0.0
      %v2458 = vmax.f32 %v2384, 0.0
      %v2459 = vmax.f32 %v2386, 0.0
      %v2460 = vmax.f32 %v2388, 0.0
      %v2461 = vmax.f32 %v2390, 0.0
      %v2462 = vmax.f32 %v2394, 0.0
      %v2463 = vmax.f32 %v2396, 0.0
      %v2464 = vmax.f32 %v2398, 0.0
      %v2465 = vmax.f32 %v2400, 0.0
      %v2466 = vld [vmem:[%s9] sm:$0xff]
      %v2467 = vpack.c.bf16 %v2404, %v2402
      %v2468 = vpack.c.bf16 %v2405, %v2403
      %v2469 = vpack.c.bf16 %v2408, %v2406
      %v2470 = vpack.c.bf16 %v2409, %v2407
      %v2471 = vpack.c.bf16 %v2412, %v2410
      %v2472 = vpack.c.bf16 %v2413, %v2411
      %v2473 = vpack.c.bf16 %v2416, %v2414
      %v2474 = vpack.c.bf16 %v2417, %v2415
      %v2475 = vpack.c.bf16 %v2420, %v2418
      %v2476 = vpack.c.bf16 %v2421, %v2419
      %v2477 = vpack.c.bf16 %v2424, %v2422
      %v2478 = vpack.c.bf16 %v2425, %v2423
      %v2479 = vpack.c.bf16 %v2428, %v2426
      %v2480 = vpack.c.bf16 %v2429, %v2427
      %v2481 = vpack.c.bf16 %v2432, %v2430
      %v2482 = vpack.c.bf16 %v2433, %v2431
      %v2483 = vpack.c.bf16 %v2436, %v2434
      %v2484 = vpack.c.bf16 %v2437, %v2435
      %v2485 = vpack.c.bf16 %v2440, %v2438
      %v2486 = vpack.c.bf16 %v2441, %v2439
      %v2487 = vpack.c.bf16 %v2444, %v2442
      %v2488 = vpack.c.bf16 %v2445, %v2443
      %v2489 = vpack.c.bf16 %v2448, %v2446
      %v2490 = vpack.c.bf16 %v2449, %v2447
      %v2491 = vpack.c.bf16 %v2452, %v2450
      %v2492 = vpack.c.bf16 %v2453, %v2451
      %v2493 = vpack.c.bf16 %v2456, %v2454
      %v2494 = vpack.c.bf16 %v2457, %v2455
      %v2495 = vpack.c.bf16 %v2460, %v2458
      %v2496 = vpack.c.bf16 %v2461, %v2459
      %v2497 = vpack.c.bf16 %v2464, %v2462
      %v2498 = vpack.c.bf16 %v2465, %v2463
      %v2499 = vld [vmem:[%s10] sm:$0x7f]
      %2501 = vset.pattern.permute.xlu0 0
      %2502 = vperm.xlu0 %2501, %v2499
      %v2503 = vpop.permute.xlu0 %2502
      %v2506 = vunpack.c.l.b16 %v2466
      %v2507 = vunpack.c.h.b16 %v2466
      %v2508 = vpack.c.b16 %v2506, %v2506
      %v2509 = vpack.c.b16 %v2507, %v2507
      %2512 = vmatprep.subr.bf16.mxu0 %v2468
      %2513 = vmatpush1.bf16.msra.mxu0 %v2467
      %2514 = vmatprep.subr.bf16.mxu0 %v2470
      %2515 = vmatpush1.bf16.msra.mxu0 %v2469
      %2516 = vmatprep.subr.bf16.mxu0 %v2472
      %2517 = vmatpush1.bf16.msra.mxu0 %v2471
      %2518 = vmatprep.subr.bf16.mxu0 %v2474
      %2519 = vmatpush1.bf16.msra.mxu0 %v2473
      %2520 = vmatprep.subr.bf16.mxu0 %v2476
      %2521 = vmatpush1.bf16.msra.mxu0 %v2475
      %2522 = vmatprep.subr.bf16.mxu0 %v2478
      %2523 = vmatpush1.bf16.msra.mxu0 %v2477
      %2524 = vmatprep.subr.bf16.mxu0 %v2480
      %2525 = vmatpush1.bf16.msra.mxu0 %v2479
      %2526 = vmatprep.subr.bf16.mxu0 %v2482
      %2527 = vmatpush1.bf16.msra.mxu0 %v2481
      %2528 = vmatprep.subr.bf16.mxu0 %v2484
      %2529 = vmatpush1.bf16.msra.mxu0 %v2483
      %2530 = vmatprep.subr.bf16.mxu0 %v2486
      %2531 = vmatpush1.bf16.msra.mxu0 %v2485
      %2532 = vmatprep.subr.bf16.mxu0 %v2488
      %2533 = vmatpush1.bf16.msra.mxu0 %v2487
      %2534 = vmatprep.subr.bf16.mxu0 %v2490
      %2535 = vmatpush1.bf16.msra.mxu0 %v2489
      %2536 = vmatprep.subr.bf16.mxu0 %v2492
      %2537 = vmatpush1.bf16.msra.mxu0 %v2491
      %2538 = vmatprep.subr.bf16.mxu0 %v2494
      %2539 = vmatpush1.bf16.msra.mxu0 %v2493
      %2540 = vmatprep.subr.bf16.mxu0 %v2496
      %2541 = vmatpush1.bf16.msra.mxu0 %v2495
      %2542 = vmatprep.subr.bf16.mxu0 %v2498
      %2543 = vmatpush1.bf16.msra.mxu0 %v2497
      %2544 = vmatprep.mubr.bf16.mxu0 %v2509
      %2545 = vmatmul.mubr.bf16.gmra.mrb[0].mxu0 %v2508
      %v2546 = vpop.f32.mrb[0].mxu0
      %v2547 = vadd.f32 %v2503, %v2546
      %v2548 = vpop.f32.mrb[0].mxu0
      %v2549 = vadd.f32 %v2503, %v2548
      %v2550 = vpop.f32.mrb[0].mxu0
      %v2551 = vpop.f32.mrb[0].mxu0
      %2552 = vdwg.mxu0
      %2553 = vst [vmem:[%s460] sm:$0x7f] %v2547
      %2554 = vst [vmem:[%s460 + $0x8] sm:$0x7f] %v2549
      %s2555 = smul.u32 2, %s27
      %p2556 = scmp.lt.s32.totalorder %s26, 1
      %s2557 = scalar_select %p2556, %s26, 1
      %p2558 = scmp.lt.s32.totalorder %s2555, 1
      %s2559 = scalar_select %p2558, %s2555, 1
      %s2560 = smul.addr %s2557, 2
      %s2561 = sadd.s32 %s2559, %s2560
      %s2562 = smul.addr %s2561, 8
      %s2563 = scalar_lea.vmem %s11, %s2562
      // Predicated region
      $region65: #{final_decoder_forward.1} parent=63 // pred_check
        %p2564 = pneg %p299
      $region66: #{final_decoder_forward.1} parent=63 // pred_check_branch
        %2566 = sbr.rel (%p2564) target = $region68
      $region67: #{final_decoder_forward.1} parent=63 // pred_region
        %s2567 = smul.u32 2, %s27
      $region68: #{final_decoder_forward.1} parent=63 // pred_fallthru
        _
    $region64: #{final_decoder_forward.1} parent=5 // pred_fallthru
      _
    %p2568 = scmp.le.s32.totalorder 2, %s17
    // Predicated region
    $region69: #{final_decoder_forward.1} parent=5 // pred_check
      %p2569 = pneg %p2568
    $region70: #{final_decoder_forward.1} parent=5 // pred_check_branch
      %2571 = sbr.rel (%p2569) target = $region72
    $region71: #{final_decoder_forward.1} parent=5 // pred_region
      %s2572 = ssub.s32 %s17, 2
      // Predicated region
      $region73: #{final_decoder_forward.1} parent=71 // pred_check
        %p2573 = pneg %p305
      $region74: #{final_decoder_forward.1} parent=71 // pred_check_branch
        %2575 = sbr.rel (%p2573) target = $region76
      $region75: #{final_decoder_forward.1} parent=71 // pred_region
        %s2576 = smul.u32 2, %s29
        %p2577 = scmp.lt.s32.totalorder %s28, 1
        %s2578 = scalar_select %p2577, %s28, 1
        %p2579 = scmp.lt.s32.totalorder %s2576, 1
        %s2580 = scalar_select %p2579, %s2576, 1
        %s2581 = smul.addr %s2578, 2
        %s2582 = sadd.s32 %s2580, %s2581
        %s2583 = smul.addr %s2582, 8
        %s2584 = scalar_lea.vmem %s11, %s2583
      $region76: #{final_decoder_forward.1} parent=71 // pred_fallthru
        _
    $region72: #{final_decoder_forward.1} parent=5 // pred_fallthru
      _
  $region6: #{final_decoder_forward.1} parent=0 // loop_footer
    %s21 = sadd.s32 1, %s17
  $region7: #{final_decoder_forward.1} parent=0 // loop_footer_branch
    %16 = sbr.rel target = $region3
  $region8: #{final_decoder_forward.1} parent=0 // loop_exit
    _

</llo_original>
